<compile_context>
chip_gen: v6e
topology: v6e:2x2x1
jax: 0.10.0
libtpu: 0.0.40
codegen_flags: <defaults>
</compile_context>

<pallas_src>
import jax
import jax.numpy as jnp
from jax.experimental import pallas as pl
from jax.experimental.pallas import tpu as pltpu

HID = 512   # hidden channels fixed by the module
LANE = 128  # TPU lane width


def _round_up(x, m):
    return ((x + m - 1) // m) * m


def _rpn_kernel(p_ref, w3_ref, b3_ref, wh_ref, bh_ref, out_ref, feat_ref):
    # p_ref  : (TM, TK)   im2col patch tile (rows = output pixels)
    # w3_ref : (TK, HID)  3x3 conv weight, flattened (dy,dx,C) along K
    # b3_ref : (1, HID)
    # wh_ref : (HID, NP)  fused head weight [wo | wt | zero pad]
    # bh_ref : (1, NP)    fused head bias   [bo | bt | zero pad]
    # out_ref: (TM, NP)   lane-dense fused head output
    # feat_ref: (TM, HID) f32 accumulator scratch (persists across K axis)
    k = pl.program_id(1)

    @pl.when(k == 0)
    def _():
        feat_ref[...] = jnp.zeros_like(feat_ref)

    feat_ref[...] += jnp.dot(p_ref[...], w3_ref[...],
                             preferred_element_type=jnp.float32)

    @pl.when(k == pl.num_programs(1) - 1)
    def _():
        h = jnp.maximum(feat_ref[...] + b3_ref[...], 0.0)  # bias + ReLU
        out_ref[...] = (jnp.dot(h, wh_ref[...],
                                preferred_element_type=jnp.float32)
                        + bh_ref[...]).astype(out_ref.dtype)


def rpn_forward(x_nchw, params, image_width=None, image_height=None):
    """x_nchw: (B, C, H, W) float32. Returns (objectnesses (B*H*W*A, 2),
    transformers (B*H*W*A, 4)) exactly as the PyTorch module."""
    del image_width, image_height  # unused in forward (matches PyTorch)
    w3, b3, wo, bo, wt, bt = (params["w3"], params["b3"], params["wo"],
                              params["bo"], params["wt"], params["bt"])
    B, C, H, W = x_nchw.shape
    A2 = wo.shape[1]
    A4 = wt.shape[1]
    M = B * H * W
    K = 9 * C

    # --- tiling parameters ---
    if K <= 512:
        Kp = _round_up(K, LANE)     # lane-dense K, single K tile
        TK = Kp
    else:
        TK = 512
        Kp = _round_up(K, TK)
    NP = _round_up(A2 + A4, LANE)   # lane-dense fused head width
    TM = M if M < 256 else 256      # 256-row spatial tiles

    # --- wrapper-side layout plumbing (im2col, weight fusion, padding) ---
    x = jnp.transpose(x_nchw, (0, 2, 3, 1))                 # NHWC
    xp = jnp.pad(x, ((0, 0), (1, 1), (1, 1), (0, 0)))       # conv padding=1
    cols = [xp[:, dy:dy + H, dx:dx + W, :]
            for dy in range(3) for dx in range(3)]
    patches = jnp.concatenate(cols, axis=-1).reshape(M, K)  # (M, 9*C)
    if Kp > K:
        patches = jnp.pad(patches, ((0, 0), (0, Kp - K)))

    w3m = w3.reshape(K, HID)                                # (dy,dx,C) -> K
    if Kp > K:
        w3m = jnp.pad(w3m, ((0, Kp - K), (0, 0)))

    wh = jnp.concatenate([wo, wt], axis=1)                  # (HID, A2+A4)
    bh = jnp.concatenate([bo, bt], axis=1)                  # (1,   A2+A4)
    if NP > A2 + A4:
        wh = jnp.pad(wh, ((0, 0), (0, NP - (A2 + A4))))
        bh = jnp.pad(bh, ((0, 0), (0, NP - (A2 + A4))))

    grid = (pl.cdiv(M, TM), Kp // TK)

    flops = 2 * M * Kp * HID + 2 * M * HID * NP
    bytes_accessed = 4 * (M * Kp + Kp * HID + HID + HID * NP + NP + M * NP)

    out = pl.pallas_call(
        _rpn_kernel,
        out_shape=jax.ShapeDtypeStruct((M, NP), jnp.float32),
        grid_spec=pltpu.PrefetchScalarGridSpec(
            num_scalar_prefetch=0,
            grid=grid,
            in_specs=[
                pl.BlockSpec((TM, TK), lambda i, k: (i, k)),    # patches
                pl.BlockSpec((TK, HID), lambda i, k: (k, 0)),   # w3
                pl.BlockSpec((1, HID), lambda i, k: (0, 0)),    # b3
                pl.BlockSpec((HID, NP), lambda i, k: (0, 0)),   # fused head W
                pl.BlockSpec((1, NP), lambda i, k: (0, 0)),     # fused head b
            ],
            out_specs=pl.BlockSpec((TM, NP), lambda i, k: (i, 0)),
            scratch_shapes=[pltpu.VMEM((TM, HID), jnp.float32)],
        ),
        compiler_params=pltpu.CompilerParams(
            dimension_semantics=("parallel", "arbitrary"),
            vmem_limit_bytes=48 * 1024 * 1024),
        cost_estimate=pl.CostEstimate(
            flops=flops, transcendentals=0, bytes_accessed=bytes_accessed),
    )(patches, w3m, b3, wh, bh)

    # PyTorch's permute(0,2,3,1).view(-1,k) == NHWC flatten then reshape.
    objectnesses = out[:, :A2].reshape(-1, 2)
    transformers = out[:, A2:A2 + A4].reshape(-1, 4)
    return objectnesses, transformers


def _reference_forward(x_nchw, params):
    """Plain-JAX reference (for a sanity check)."""
    w3, b3, wo, bo, wt, bt = (params["w3"], params["b3"], params["wo"],
                              params["bo"], params["wt"], params["bt"])
    x = jnp.transpose(x_nchw, (0, 2, 3, 1))  # NHWC
    h = jax.lax.conv_general_dilated(
        x, w3, window_strides=(1, 1), padding="SAME",
        dimension_numbers=("NHWC", "HWIO", "NHWC"))
    h = jnp.maximum(h + b3[0], 0.0)
    obj = jnp.einsum("bhwc,co->bhwo", h, wo) + bo[0]
    trn = jnp.einsum("bhwc,co->bhwo", h, wt) + bt[0]
    return obj.reshape(-1, 2), trn.reshape(-1, 4)


def init_params(key, c_in, num_anchors):
    ks = jax.random.split(key, 6)
    a2, a4 = num_anchors * 2, num_anchors * 4
    return {
        "w3": jax.random.normal(ks[0], (3, 3, c_in, HID), jnp.float32) * 0.05,
        "b3": jax.random.normal(ks[1], (1, HID), jnp.float32) * 0.01,
        "wo": jax.random.normal(ks[2], (HID, a2), jnp.float32) * 0.05,
        "bo": jax.random.normal(ks[3], (1, a2), jnp.float32) * 0.01,
        "wt": jax.random.normal(ks[4], (HID, a4), jnp.float32) * 0.05,
        "bt": jax.random.normal(ks[5], (1, a4), jnp.float32) * 0.01,
    }


if __name__ == "__main__":
    # Small deterministic config: num_features_out=4, 3 ratios x 3 scales = 9 anchors
    B, C, H, W = 2, 4, 16, 16
    anchor_ratios = [(1, 1), (1, 2), (2, 1)]
    anchor_scales = [1, 2, 4]
    num_anchors = len(anchor_ratios) * len(anchor_scales)  # 9

    key = jax.random.PRNGKey(0)
    kx, kp = jax.random.split(key)
    x = jax.random.normal(kx, (B, C, H, W), jnp.float32)
    params = init_params(kp, C, num_anchors)

    obj, trn = rpn_forward(x, params, image_width=W * 16, image_height=H * 16)
    obj, trn = jax.block_until_ready((obj, trn))

    ref_obj, ref_trn = _reference_forward(x, params)
    assert obj.shape == (B * H * W * num_anchors, 2)
    assert trn.shape == (B * H * W * num_anchors, 4)
    assert jnp.allclose(obj, ref_obj, atol=1e-3, rtol=1e-3)
    assert jnp.allclose(trn, ref_trn, atol=1e-3, rtol=1e-3)

    print("KERNEL_OK")
</pallas_src>

<mosaic_0001>
module attributes {stable_mosaic.version = 11 : i64} {
  func.func @_rpn_kernel(%arg0: i32, %arg1: i32, %arg2: memref<256x128xf32, #tpu.memory_space<vmem>>, %arg3: memref<128x512xf32, #tpu.memory_space<vmem>>, %arg4: memref<1x512xf32, #tpu.memory_space<vmem>>, %arg5: memref<512x128xf32, #tpu.memory_space<vmem>>, %arg6: memref<1x128xf32, #tpu.memory_space<vmem>>, %arg7: memref<256x128xf32, #tpu.memory_space<vmem>>, %arg8: memref<256x512xf32, #tpu.memory_space<vmem>>) attributes {dimension_semantics = [#tpu.dimension_semantics<parallel>, #tpu.dimension_semantics<arbitrary>], iteration_bounds = array<i64: 2, 1>, scalar_prefetch = 0 : i64, scratch_operands = 1 : i64, tpu.core_type = #tpu.core_type<tc>, window_params = [{transform_indices = @transform_0, window_bounds = array<i64: 256, 128>}, {transform_indices = @transform_1, window_bounds = array<i64: 128, 512>}, {pipeline_mode = #tpu.pipeline_mode<synchronous>, transform_indices = @transform_2, window_bounds = array<i64: 1, 512>}, {pipeline_mode = #tpu.pipeline_mode<synchronous>, transform_indices = @transform_3, window_bounds = array<i64: 512, 128>}, {pipeline_mode = #tpu.pipeline_mode<synchronous>, transform_indices = @transform_4, window_bounds = array<i64: 1, 128>}, {transform_indices = @transform_5, window_bounds = array<i64: 256, 128>}]} {
    %c0_i32 = arith.constant 0 : i32
    %0 = arith.cmpi eq, %arg1, %c0_i32 : i32
    %1 = arith.extui %0 : i1 to i32
    %c0_i32_0 = arith.constant 0 : i32
    %2 = arith.cmpi ne, %1, %c0_i32_0 : i32
    scf.if %2 {
      %cst_10 = arith.constant 0.000000e+00 : f32
      %12 = vector.broadcast %cst_10 : f32 to vector<256x512xf32>
      %c0_11 = arith.constant 0 : index
      %c0_12 = arith.constant 0 : index
      %13 = vector.load %arg8[%c0_11, %c0_12] : memref<256x512xf32, #tpu.memory_space<vmem>>, vector<256x512xf32>
      tpu.vector_store %arg8[%c0_11, %c0_12], %12 {strides = array<i32>} : memref<256x512xf32, #tpu.memory_space<vmem>>, vector<256x512xf32>,
    } else {
    }
    %c0 = arith.constant 0 : index
    %c0_1 = arith.constant 0 : index
    %3 = vector.load %arg8[%c0, %c0_1] : memref<256x512xf32, #tpu.memory_space<vmem>>, vector<256x512xf32>
    %c0_2 = arith.constant 0 : index
    %c0_3 = arith.constant 0 : index
    %4 = vector.load %arg2[%c0_2, %c0_3] : memref<256x128xf32, #tpu.memory_space<vmem>>, vector<256x128xf32>
    %c0_4 = arith.constant 0 : index
    %c0_5 = arith.constant 0 : index
    %5 = vector.load %arg3[%c0_4, %c0_5] : memref<128x512xf32, #tpu.memory_space<vmem>>, vector<128x512xf32>
    %cst = arith.constant dense<0.000000e+00> : vector<256x512xf32>
    %6 = tpu.matmul %4, %5, %cst {dimension_numbers = #tpu.dot_dimension_numbers<[1], [0], [0], [1], [0, 0, 1, 1], [], []>} : vector<256x128xf32>, vector<128x512xf32>, vector<256x512xf32> -> vector<256x512xf32>
    %7 = arith.addf %3, %6 : vector<256x512xf32>
    %c0_6 = arith.constant 0 : index
    %c0_7 = arith.constant 0 : index
    %8 = vector.load %arg8[%c0_6, %c0_7] : memref<256x512xf32, #tpu.memory_space<vmem>>, vector<256x512xf32>
    tpu.vector_store %arg8[%c0_6, %c0_7], %7 {strides = array<i32>} : memref<256x512xf32, #tpu.memory_space<vmem>>, vector<256x512xf32>,
    %c0_i32_8 = arith.constant 0 : i32
    %9 = arith.cmpi eq, %arg1, %c0_i32_8 : i32
    %10 = arith.extui %9 : i1 to i32
    %c0_i32_9 = arith.constant 0 : i32
    %11 = arith.cmpi ne, %10, %c0_i32_9 : i32
    scf.if %11 {
      %c0_10 = arith.constant 0 : index
      %c0_11 = arith.constant 0 : index
      %12 = vector.load %arg8[%c0_10, %c0_11] : memref<256x512xf32, #tpu.memory_space<vmem>>, vector<256x512xf32>
      %c0_12 = arith.constant 0 : index
      %c0_13 = arith.constant 0 : index
      %13 = vector.load %arg4[%c0_12, %c0_13] : memref<1x512xf32, #tpu.memory_space<vmem>>, vector<1x512xf32>
      %14 = vector.broadcast %13 : vector<1x512xf32> to vector<256x512xf32>
      %15 = arith.addf %12, %14 : vector<256x512xf32>
      %cst_14 = arith.constant 0.000000e+00 : f32
      %16 = vector.broadcast %cst_14 : f32 to vector<256x512xf32>
      %17 = arith.maximumf %15, %16 : vector<256x512xf32>
      %c0_15 = arith.constant 0 : index
      %c0_16 = arith.constant 0 : index
      %18 = vector.load %arg5[%c0_15, %c0_16] : memref<512x128xf32, #tpu.memory_space<vmem>>, vector<512x128xf32>
      %cst_17 = arith.constant dense<0.000000e+00> : vector<256x128xf32>
      %19 = tpu.matmul %17, %18, %cst_17 {dimension_numbers = #tpu.dot_dimension_numbers<[1], [0], [0], [1], [0, 0, 1, 1], [], []>} : vector<256x512xf32>, vector<512x128xf32>, vector<256x128xf32> -> vector<256x128xf32>
      %c0_18 = arith.constant 0 : index
      %c0_19 = arith.constant 0 : index
      %20 = vector.load %arg6[%c0_18, %c0_19] : memref<1x128xf32, #tpu.memory_space<vmem>>, vector<1x128xf32>
      %21 = vector.broadcast %20 : vector<1x128xf32> to vector<256x128xf32>
      %22 = arith.addf %19, %21 : vector<256x128xf32>
      %c0_20 = arith.constant 0 : index
      %c0_21 = arith.constant 0 : index
      %23 = vector.load %arg7[%c0_20, %c0_21] : memref<256x128xf32, #tpu.memory_space<vmem>>, vector<256x128xf32>
      tpu.vector_store %arg7[%c0_20, %c0_21], %22 {strides = array<i32>} : memref<256x128xf32, #tpu.memory_space<vmem>>, vector<256x128xf32>,
    } else {
    }
    return
  }
  func.func @transform_0(%arg0: i32, %arg1: i32) -> (i32, i32) {
    %c0_i32 = arith.constant 0 : i32
    return %arg0, %arg1 : i32, i32
  }
  func.func @transform_1(%arg0: i32, %arg1: i32) -> (i32, i32) {
    %c0_i32 = arith.constant 0 : i32
    %c0_i32_0 = arith.constant 0 : i32
    return %arg1, %c0_i32 : i32, i32
  }
  func.func @transform_2(%arg0: i32, %arg1: i32) -> (i32, i32) {
    %c0_i32 = arith.constant 0 : i32
    %c0_i32_0 = arith.constant 0 : i32
    %c0_i32_1 = arith.constant 0 : i32
    return %c0_i32, %c0_i32_0 : i32, i32
  }
  func.func @transform_3(%arg0: i32, %arg1: i32) -> (i32, i32) {
    %c0_i32 = arith.constant 0 : i32
    %c0_i32_0 = arith.constant 0 : i32
    %c0_i32_1 = arith.constant 0 : i32
    return %c0_i32, %c0_i32_0 : i32, i32
  }
  func.func @transform_4(%arg0: i32, %arg1: i32) -> (i32, i32) {
    %c0_i32 = arith.constant 0 : i32
    %c0_i32_0 = arith.constant 0 : i32
    %c0_i32_1 = arith.constant 0 : i32
    return %c0_i32, %c0_i32_0 : i32, i32
  }
  func.func @transform_5(%arg0: i32, %arg1: i32) -> (i32, i32) {
    %c0_i32 = arith.constant 0 : i32
    %c0_i32_0 = arith.constant 0 : i32
    return %arg0, %c0_i32 : i32, i32
  }
}

</mosaic_0001>

<llo_original>
// kernel: tpu_custom_call.1
$region0: #{tpu_custom_call.1}
  #allocation0 [shape = 'u32[]', space=smem, size = 0x4, offset = 0x4, fixed_abs, tag = 'smem constant byte address 0x4 - core index']
  #allocation1 [shape = 'u32[144,128]{1,0:T(1,128)}', space=vmem, size = 0x12000, scoped, tag = 'internal scratch']
  #allocation2 [shape = 'f32[256,512]{1,0:T(8,128)}', space=vmem, size = 0x80000, scoped, tag = 'scratch operand']
  %s0 = inlined_call_operand.hbm [shape: f32[512,128], index: 0, kind: input, shape index: {}]
  %s1 = inlined_call_operand.hbm [shape: f32[128,512], index: 1, kind: input, shape index: {}]
  %s2 = inlined_call_operand.hbm [shape: f32[1,512], index: 2, kind: input, shape index: {}]
  %s3 = inlined_call_operand.hbm [shape: f32[512,128], index: 3, kind: input, shape index: {}]
  %s4 = inlined_call_operand.vmem [shape: f32[1,128], index: 4, kind: input, shape index: {}]
  %s5 = inlined_call_operand.hbm [shape: f32[512,128], index: 5, kind: output, shape index: {}]
  %s6 = sld [smem:[#allocation0]]
  $region77: #{tpu_custom_call.1} parent=0
    _
  %s8 = ssub.s32 1, %s6
  %s9 = scalar_select 0, %s8, %s6
  $region1: #{tpu_custom_call.1} parent=0
    #allocation3 [shape = 'u8[262144]{0}', space=vmem, size = 0x40000, scoped, tag = 'input window, operand 0']
    #allocation4 [shape = 's32[2]{0}', space=sflag, size = 0x8, scoped, tag = 'scoped memory for tpu_custom_call.1']
    #allocation5 [shape = 's32[2]{0}', space=sflag, size = 0x8, scoped, tag = 'scoped memory for tpu_custom_call.1']
    #allocation6 [shape = 'u8[262144]{0}', space=vmem, size = 0x40000, scoped, tag = 'input window, operand 1, single buffered']
    #allocation7 [shape = 's32[1]{0}', space=sflag, size = 0x4, scoped, tag = 'scoped memory for tpu_custom_call.1']
    #allocation8 [shape = 'u8[2048]{0}', space=vmem, size = 0x800, scoped, tag = 'input window, operand 2, single buffered']
    #allocation9 [shape = 'u8[262144]{0}', space=vmem, size = 0x40000, scoped, tag = 'input window, operand 3, single buffered']
    #allocation10 [shape = 's32[1]{0}', space=sflag, size = 0x4, scoped, tag = 'scoped memory for tpu_custom_call.1']
    #allocation11 [shape = 'u8[262144]{0}', space=vmem, size = 0x40000, scoped, tag = 'output window, operand 0']
    %10 = vsyncpa [#allocation4], 0
    %s11 = scalar_lea.sflag [#allocation4], 1
    %12 = vsyncpa %s11, 0
    %13 = vsyncpa [#allocation7], 0
    %14 = vsyncpa [#allocation10], 0
    %15 = vsyncpa [#allocation5], 0
    %s16 = scalar_lea.sflag [#allocation5], 1
    %17 = vsyncpa %s16, 0
    loop: start=0, step=1, limit=4
    $region2: #{tpu_custom_call.1} parent=1 // loop_pre_header
      _
    $region3: #{tpu_custom_call.1} parent=1 // loop_header
      %s19 = sphi 0, %s23
      %p20 = scmp.ge.s32.totalorder %s19, 4
      %s26 = sphi 0, %s38
      %s27 = sphi 0, %s34
      %s28 = sphi 0, %s26
      %s29 = sphi 0, %s27
      %s30 = sphi 0, %s28
      %s31 = sphi 0, %s29
      %s43 = sphi 0, %s45
      %s46 = sphi 0, %s43
      %s47 = sphi 0, %s46
      %s63 = sphi 0, %s47
      %s69 = sphi 0, %s71
      %s72 = sphi 0, %s69
      %s73 = sphi 0, %s72
      %s89 = sphi 0, %s73
      %s93 = sphi 0, %s93
      %s95 = sphi 0, %s93
      %s96 = sphi 0, %s95
      %s110 = sphi 0, %s96
      %s114 = sphi 0, %s114
      %s116 = sphi 0, %s114
      %s117 = sphi 0, %s116
      %s131 = sphi 0, %s117
      %s135 = sphi 0, %s135
      %s137 = sphi 0, %s135
      %s138 = sphi 0, %s137
      %s152 = sphi 0, %s138
      %s158 = sphi 0, %s160
      %s161 = sphi 0, %s158
      %s162 = sphi 0, %s161
      %s178 = sphi 0, %s162
    $region4: #{tpu_custom_call.1} parent=1 // loop_header_branch
      %22 = sbr.rel (%p20) target = $region8
    $region5: #{tpu_custom_call.1} parent=1 // loop_body
      %s24 = ssub.s32 %s19, 1
      %s25 = ssub.s32 %s19, 2
      %s32 = sadd.s32 1, %s27
      %p33 = scmp.ge.s32.totalorder %s32, 1
      %s34 = scalar_select %p33, 0, %s32
      %s35 = sadd.s32 1, %s26
      %s36 = scalar_select %p33, %s35, %s26
      %p37 = scmp.ge.s32.totalorder %s36, 2
      %s38 = scalar_select %p37, 0, %s36
      %s39 = ssub.s32 %s26, %s38
      %s40 = ssub.s32 %s27, %s34
      %s41 = sor.u32 %s39, %s40
      %p42 = scmp.eq.s32.totalorder %s41, 0
      %s44 = sadd.s32 %s43, 1
      %s45 = scalar_select %p42, %s43, %s44
      %p48 = pneg %p42
      %p49 = scmp.eq.s32.totalorder %s19, 1
      %p50 = por %p48, %p49
      %p51 = scmp.ne.s32.totalorder %s43, %s46
      %p52 = scmp.eq.s32.totalorder %s19, 0
      %p53 = por %p51, %p52
      %p54 = scmp.ne.s32.totalorder %s43, %s46
      %p55 = scmp.eq.s32.totalorder %s24, 1
      %p56 = por %p54, %p55
      %p57 = scmp.ne.s32.totalorder %s46, %s47
      %p58 = scmp.eq.s32.totalorder %s24, 0
      %p59 = por %p57, %p58
      %p60 = scmp.ne.s32.totalorder %s46, %s47
      %p61 = scmp.eq.s32.totalorder %s25, 1
      %p62 = por %p60, %p61
      %p64 = scmp.ne.s32.totalorder %s47, %s63
      %p65 = scmp.eq.s32.totalorder %s25, 0
      %p66 = por %p64, %p65
      %s67 = ssub.s32 %s27, %s34
      %p68 = scmp.eq.s32.totalorder %s67, 0
      %s70 = sadd.s32 %s69, 1
      %s71 = scalar_select %p68, %s69, %s70
      %p74 = pneg %p68
      %p75 = scmp.eq.s32.totalorder %s19, 1
      %p76 = por %p74, %p75
      %p77 = scmp.ne.s32.totalorder %s69, %s72
      %p78 = scmp.eq.s32.totalorder %s19, 0
      %p79 = por %p77, %p78
      %p80 = scmp.ne.s32.totalorder %s69, %s72
      %p81 = scmp.eq.s32.totalorder %s24, 1
      %p82 = por %p80, %p81
      %p83 = scmp.ne.s32.totalorder %s72, %s73
      %p84 = scmp.eq.s32.totalorder %s24, 0
      %p85 = por %p83, %p84
      %p86 = scmp.ne.s32.totalorder %s72, %s73
      %p87 = scmp.eq.s32.totalorder %s25, 1
      %p88 = por %p86, %p87
      %p90 = scmp.ne.s32.totalorder %s73, %s89
      %p91 = scmp.eq.s32.totalorder %s25, 0
      %p92 = por %p90, %p91
      %s94 = sadd.s32 %s93, 1
      %p97 = scmp.eq.s32.totalorder %s19, 1
      %p98 = scmp.ne.s32.totalorder %s93, %s95
      %p99 = scmp.eq.s32.totalorder %s19, 0
      %p100 = por %p98, %p99
      %p101 = scmp.ne.s32.totalorder %s93, %s95
      %p102 = scmp.eq.s32.totalorder %s24, 1
      %p103 = por %p101, %p102
      %p104 = scmp.ne.s32.totalorder %s95, %s96
      %p105 = scmp.eq.s32.totalorder %s24, 0
      %p106 = por %p104, %p105
      %p107 = scmp.ne.s32.totalorder %s95, %s96
      %p108 = scmp.eq.s32.totalorder %s25, 1
      %p109 = por %p107, %p108
      %p111 = scmp.ne.s32.totalorder %s96, %s110
      %p112 = scmp.eq.s32.totalorder %s25, 0
      %p113 = por %p111, %p112
      %s115 = sadd.s32 %s114, 1
      %p118 = scmp.eq.s32.totalorder %s19, 1
      %p119 = scmp.ne.s32.totalorder %s114, %s116
      %p120 = scmp.eq.s32.totalorder %s19, 0
      %p121 = por %p119, %p120
      %p122 = scmp.ne.s32.totalorder %s114, %s116
      %p123 = scmp.eq.s32.totalorder %s24, 1
      %p124 = por %p122, %p123
      %p125 = scmp.ne.s32.totalorder %s116, %s117
      %p126 = scmp.eq.s32.totalorder %s24, 0
      %p127 = por %p125, %p126
      %p128 = scmp.ne.s32.totalorder %s116, %s117
      %p129 = scmp.eq.s32.totalorder %s25, 1
      %p130 = por %p128, %p129
      %p132 = scmp.ne.s32.totalorder %s117, %s131
      %p133 = scmp.eq.s32.totalorder %s25, 0
      %p134 = por %p132, %p133
      %s136 = sadd.s32 %s135, 1
      %p139 = scmp.eq.s32.totalorder %s19, 1
      %p140 = scmp.ne.s32.totalorder %s135, %s137
      %p141 = scmp.eq.s32.totalorder %s19, 0
      %p142 = por %p140, %p141
      %p143 = scmp.ne.s32.totalorder %s135, %s137
      %p144 = scmp.eq.s32.totalorder %s24, 1
      %p145 = por %p143, %p144
      %p146 = scmp.ne.s32.totalorder %s137, %s138
      %p147 = scmp.eq.s32.totalorder %s24, 0
      %p148 = por %p146, %p147
      %p149 = scmp.ne.s32.totalorder %s137, %s138
      %p150 = scmp.eq.s32.totalorder %s25, 1
      %p151 = por %p149, %p150
      %p153 = scmp.ne.s32.totalorder %s138, %s152
      %p154 = scmp.eq.s32.totalorder %s25, 0
      %p155 = por %p153, %p154
      %s156 = ssub.s32 %s26, %s38
      %p157 = scmp.eq.s32.totalorder %s156, 0
      %s159 = sadd.s32 %s158, 1
      %s160 = scalar_select %p157, %s158, %s159
      %p163 = pneg %p157
      %p164 = scmp.eq.s32.totalorder %s19, 1
      %p165 = por %p163, %p164
      %p166 = scmp.ne.s32.totalorder %s158, %s161
      %p167 = scmp.eq.s32.totalorder %s19, 0
      %p168 = por %p166, %p167
      %p169 = scmp.ne.s32.totalorder %s158, %s161
      %p170 = scmp.eq.s32.totalorder %s24, 1
      %p171 = por %p169, %p170
      %p172 = scmp.ne.s32.totalorder %s161, %s162
      %p173 = scmp.eq.s32.totalorder %s24, 0
      %p174 = por %p172, %p173
      %p175 = scmp.ne.s32.totalorder %s161, %s162
      %p176 = scmp.eq.s32.totalorder %s25, 1
      %p177 = por %p175, %p176
      %p179 = scmp.ne.s32.totalorder %s162, %s178
      %p180 = scmp.eq.s32.totalorder %s25, 0
      %p181 = por %p179, %p180
      %p182 = scmp.le.s32.totalorder 1, %s19
      %p183 = scmp.lt.s32.totalorder %s19, 3
      %p184 = pnand %p182, %p183
      %p185 = pneg %p184
      // Predicated region
      $region9: #{tpu_custom_call.1} parent=5 // pred_check
        _
      $region10: #{tpu_custom_call.1} parent=5 // pred_check_branch
        %187 = sbr.rel (%p184) target = $region12
      $region11: #{tpu_custom_call.1} parent=5 // pred_region
        %s188 = ssub.s32 %s19, 1
        // Predicated region
        $region13: #{tpu_custom_call.1} parent=11 // pred_check
          %p189 = pneg %p85
        $region14: #{tpu_custom_call.1} parent=11 // pred_check_branch
          %191 = sbr.rel (%p189) target = $region16
        $region15: #{tpu_custom_call.1} parent=11 // pred_region
          %s192 = smul.u32 16, %s29
          %s194 = ssub.s32 8192, 8192
          %195 = vsyncadd [#allocation7], %s194
          %s196 = smul.addr %s192, 4
          %s197 = smul.addr %s196, 128
          %s198 = scalar_lea.hbm %s1, %s197
          %s199 = sshll.u32 [#allocation6], 4
          %s200 = int_to_ptr.vmem [resolvable:$true] %s199
          %205 = dma.hbm_to_vmem [thread:$0]  %s198, 8192, %s200, [#allocation7], 512, 512, 32
        $region16: #{tpu_custom_call.1} parent=11 // pred_fallthru
          _
        // Predicated region
        $region17: #{tpu_custom_call.1} parent=11 // pred_check
          %p206 = pneg %p106
        $region18: #{tpu_custom_call.1} parent=11 // pred_check_branch
          %208 = sbr.rel (%p206) target = $region20
        $region19: #{tpu_custom_call.1} parent=11 // pred_region
          %s210 = ssub.s32 64, 64
          %211 = vsyncadd [#allocation7], %s210
          %s213 = sshll.u32 [#allocation8], 4
          %s214 = int_to_ptr.vmem [resolvable:$true] %s213
          %216 = dma.hbm_to_vmem [thread:$0]  %s2, 64, %s214, [#allocation7]
        $region20: #{tpu_custom_call.1} parent=11 // pred_fallthru
          _
        // Predicated region
        $region21: #{tpu_custom_call.1} parent=11 // pred_check
          %p217 = pneg %p127
        $region22: #{tpu_custom_call.1} parent=11 // pred_check_branch
          %219 = sbr.rel (%p217) target = $region24
        $region23: #{tpu_custom_call.1} parent=11 // pred_region
          %s221 = ssub.s32 8192, 8192
          %222 = vsyncadd [#allocation10], %s221
          %s223 = sshll.u32 [#allocation9], 4
          %s224 = int_to_ptr.vmem [resolvable:$true] %s223
          %229 = dma.hbm_to_vmem [thread:$0]  %s3, 8192, %s224, [#allocation10], 128, 128, 8
        $region24: #{tpu_custom_call.1} parent=11 // pred_fallthru
          _
        // Predicated region
        $region25: #{tpu_custom_call.1} parent=11 // pred_check
          %p230 = pneg %p148
        $region26: #{tpu_custom_call.1} parent=11 // pred_check_branch
          %232 = sbr.rel (%p230) target = $region28
        $region27: #{tpu_custom_call.1} parent=11 // pred_region
          _
        $region28: #{tpu_custom_call.1} parent=11 // pred_fallthru
          _
      $region12: #{tpu_custom_call.1} parent=5 // pred_fallthru
        _
      %p233 = scmp.lt.s32.totalorder %s19, 2
      // Predicated region
      $region29: #{tpu_custom_call.1} parent=5 // pred_check
        %p234 = pneg %p233
      $region30: #{tpu_custom_call.1} parent=5 // pred_check_branch
        %236 = sbr.rel (%p234) target = $region32
      $region31: #{tpu_custom_call.1} parent=5 // pred_region
        // Predicated region
        $region33: #{tpu_custom_call.1} parent=31 // pred_check
          %p237 = pneg %p53
        $region34: #{tpu_custom_call.1} parent=31 // pred_check_branch
          %239 = sbr.rel (%p237) target = $region36
        $region35: #{tpu_custom_call.1} parent=31 // pred_region
          %s240 = sand.u32 %s43, 1
          %s241 = scalar_lea.sflag [#allocation4], %s240
          %s242 = sand.u32 %s43, 1
          %s243 = smul.addr %s242, 256
          %s244 = scalar_lea.vmem [#allocation3], %s243
          %s245 = smul.u32 32, %s26
          %s247 = ssub.s32 4096, 4096
          %248 = vsyncadd %s241, %s247
          %s249 = sadd.s32 %s27, %s245
          %s250 = smul.addr %s249, 128
          %s251 = scalar_lea.hbm %s0, %s250
          %s252 = sshll.u32 %s244, 4
          %s253 = int_to_ptr.vmem [resolvable:$true] %s252
          %258 = dma.hbm_to_vmem [thread:$0]  %s251, 4096, %s253, %s241, 128, 128, 8
        $region36: #{tpu_custom_call.1} parent=31 // pred_fallthru
          _
      $region32: #{tpu_custom_call.1} parent=5 // pred_fallthru
        _
      %p259 = scmp.le.s32.totalorder 1, %s19
      %p260 = scmp.lt.s32.totalorder %s19, 3
      %p261 = pnand %p259, %p260
      %p262 = pneg %p261
      // Predicated region
      $region37: #{tpu_custom_call.1} parent=5 // pred_check
        _
      $region38: #{tpu_custom_call.1} parent=5 // pred_check_branch
        %264 = sbr.rel (%p261) target = $region40
      $region39: #{tpu_custom_call.1} parent=5 // pred_region
        %s265 = ssub.s32 %s19, 1
        %s266 = sand.u32 %s46, 1
        %s267 = scalar_lea.sflag [#allocation4], %s266
        %s268 = sand.u32 %s46, 1
        %s269 = smul.addr %s268, 256
        %s270 = scalar_lea.vmem [#allocation3], %s269
        // Predicated region
        $region41: #{tpu_custom_call.1} parent=39 // pred_check
          %p271 = pneg %p59
        $region42: #{tpu_custom_call.1} parent=39 // pred_check_branch
          %273 = sbr.rel (%p271) target = $region44
        $region43: #{tpu_custom_call.1} parent=39 // pred_region
          %274 = dma.done %s267, 4096
        $region44: #{tpu_custom_call.1} parent=39 // pred_fallthru
          _
        // Predicated region
        $region45: #{tpu_custom_call.1} parent=39 // pred_check
          %p275 = pneg %p85
        $region46: #{tpu_custom_call.1} parent=39 // pred_check_branch
          %277 = sbr.rel (%p275) target = $region48
        $region47: #{tpu_custom_call.1} parent=39 // pred_region
          %278 = dma.done [#allocation7], 8192
        $region48: #{tpu_custom_call.1} parent=39 // pred_fallthru
          _
        // Predicated region
        $region49: #{tpu_custom_call.1} parent=39 // pred_check
          %p279 = pneg %p106
        $region50: #{tpu_custom_call.1} parent=39 // pred_check_branch
          %281 = sbr.rel (%p279) target = $region52
        $region51: #{tpu_custom_call.1} parent=39 // pred_region
          %282 = dma.done [#allocation7], 64
        $region52: #{tpu_custom_call.1} parent=39 // pred_fallthru
          _
        // Predicated region
        $region53: #{tpu_custom_call.1} parent=39 // pred_check
          %p283 = pneg %p127
        $region54: #{tpu_custom_call.1} parent=39 // pred_check_branch
          %285 = sbr.rel (%p283) target = $region56
        $region55: #{tpu_custom_call.1} parent=39 // pred_region
          %286 = dma.done [#allocation10], 8192
        $region56: #{tpu_custom_call.1} parent=39 // pred_fallthru
          _
        %s287 = sand.u32 %s46, 1
        %s288 = scalar_lea.sflag [#allocation4], %s287
        %s289 = sand.u32 %s46, 1
        %s290 = smul.addr %s289, 256
        %s291 = scalar_lea.vmem [#allocation3], %s290
        %p292 = pneg %p59
        %p293 = pneg %p56
        %p294 = pneg %p85
        %p295 = pneg %p82
        %p296 = pneg %p106
        %p297 = pneg %p103
        %p298 = pneg %p127
        %p299 = pneg %p124
        %p300 = pneg %p148
        %p301 = pneg %p145
        %p302 = pneg %p174
        %p303 = pneg %p171
        %s304 = sand.u32 %s161, 1
        %s305 = scalar_lea.sflag [#allocation5], %s304
        %s306 = sand.u32 %s161, 1
        %s307 = smul.addr %s306, 256
        %s308 = scalar_lea.vmem [#allocation11], %s307
        %s309 = smul.u32 32, %s28
        %s310 = smul.u32 16, %s29
        %s311 = smul.u32 32, %s28
        %p312 = scmp.eq.s32.totalorder %s29, 0
        // Predicated region
        $region57: #{tpu_custom_call.1} parent=39 // pred_check
          %p313 = pneg %p312
        $region58: #{tpu_custom_call.1} parent=39 // pred_check_branch
          %315 = sbr.rel (%p313) target = $region60
        $region59: #{tpu_custom_call.1} parent=39 // pred_region
          %316 = vst [vmem:[#allocation2] sm:$0xff] 0.0
          %317 = vst [vmem:[#allocation2 + $0x8] sm:$0xff] 0.0
          %318 = vst [vmem:[#allocation2 + $0x10] sm:$0xff] 0.0
          %319 = vst [vmem:[#allocation2 + $0x18] sm:$0xff] 0.0
          %320 = vst [vmem:[#allocation2 + $0x20] sm:$0xff] 0.0
          %321 = vst [vmem:[#allocation2 + $0x28] sm:$0xff] 0.0
          %322 = vst [vmem:[#allocation2 + $0x30] sm:$0xff] 0.0
          %323 = vst [vmem:[#allocation2 + $0x38] sm:$0xff] 0.0
          %324 = vst [vmem:[#allocation2 + $0x40] sm:$0xff] 0.0
          %325 = vst [vmem:[#allocation2 + $0x48] sm:$0xff] 0.0
          %326 = vst [vmem:[#allocation2 + $0x50] sm:$0xff] 0.0
          %327 = vst [vmem:[#allocation2 + $0x58] sm:$0xff] 0.0
          %328 = vst [vmem:[#allocation2 + $0x60] sm:$0xff] 0.0
          %329 = vst [vmem:[#allocation2 + $0x68] sm:$0xff] 0.0
          %330 = vst [vmem:[#allocation2 + $0x70] sm:$0xff] 0.0
          %331 = vst [vmem:[#allocation2 + $0x78] sm:$0xff] 0.0
          %332 = vst [vmem:[#allocation2 + $0x80] sm:$0xff] 0.0
          %333 = vst [vmem:[#allocation2 + $0x88] sm:$0xff] 0.0
          %334 = vst [vmem:[#allocation2 + $0x90] sm:$0xff] 0.0
          %335 = vst [vmem:[#allocation2 + $0x98] sm:$0xff] 0.0
          %336 = vst [vmem:[#allocation2 + $0xa0] sm:$0xff] 0.0
          %337 = vst [vmem:[#allocation2 + $0xa8] sm:$0xff] 0.0
          %338 = vst [vmem:[#allocation2 + $0xb0] sm:$0xff] 0.0
          %339 = vst [vmem:[#allocation2 + $0xb8] sm:$0xff] 0.0
          %340 = vst [vmem:[#allocation2 + $0xc0] sm:$0xff] 0.0
          %341 = vst [vmem:[#allocation2 + $0xc8] sm:$0xff] 0.0
          %342 = vst [vmem:[#allocation2 + $0xd0] sm:$0xff] 0.0
          %343 = vst [vmem:[#allocation2 + $0xd8] sm:$0xff] 0.0
          %344 = vst [vmem:[#allocation2 + $0xe0] sm:$0xff] 0.0
          %345 = vst [vmem:[#allocation2 + $0xe8] sm:$0xff] 0.0
          %346 = vst [vmem:[#allocation2 + $0xf0] sm:$0xff] 0.0
          %347 = vst [vmem:[#allocation2 + $0xf8] sm:$0xff] 0.0
          %348 = vst [vmem:[#allocation2 + $0x100] sm:$0xff] 0.0
          %349 = vst [vmem:[#allocation2 + $0x108] sm:$0xff] 0.0
          %350 = vst [vmem:[#allocation2 + $0x110] sm:$0xff] 0.0
          %351 = vst [vmem:[#allocation2 + $0x118] sm:$0xff] 0.0
          %352 = vst [vmem:[#allocation2 + $0x120] sm:$0xff] 0.0
          %353 = vst [vmem:[#allocation2 + $0x128] sm:$0xff] 0.0
          %354 = vst [vmem:[#allocation2 + $0x130] sm:$0xff] 0.0
          %355 = vst [vmem:[#allocation2 + $0x138] sm:$0xff] 0.0
          %356 = vst [vmem:[#allocation2 + $0x140] sm:$0xff] 0.0
          %357 = vst [vmem:[#allocation2 + $0x148] sm:$0xff] 0.0
          %358 = vst [vmem:[#allocation2 + $0x150] sm:$0xff] 0.0
          %359 = vst [vmem:[#allocation2 + $0x158] sm:$0xff] 0.0
          %360 = vst [vmem:[#allocation2 + $0x160] sm:$0xff] 0.0
          %361 = vst [vmem:[#allocation2 + $0x168] sm:$0xff] 0.0
          %362 = vst [vmem:[#allocation2 + $0x170] sm:$0xff] 0.0
          %363 = vst [vmem:[#allocation2 + $0x178] sm:$0xff] 0.0
          %364 = vst [vmem:[#allocation2 + $0x180] sm:$0xff] 0.0
          %365 = vst [vmem:[#allocation2 + $0x188] sm:$0xff] 0.0
          %366 = vst [vmem:[#allocation2 + $0x190] sm:$0xff] 0.0
          %367 = vst [vmem:[#allocation2 + $0x198] sm:$0xff] 0.0
          %368 = vst [vmem:[#allocation2 + $0x1a0] sm:$0xff] 0.0
          %369 = vst [vmem:[#allocation2 + $0x1a8] sm:$0xff] 0.0
          %370 = vst [vmem:[#allocation2 + $0x1b0] sm:$0xff] 0.0
          %371 = vst [vmem:[#allocation2 + $0x1b8] sm:$0xff] 0.0
          %372 = vst [vmem:[#allocation2 + $0x1c0] sm:$0xff] 0.0
          %373 = vst [vmem:[#allocation2 + $0x1c8] sm:$0xff] 0.0
          %374 = vst [vmem:[#allocation2 + $0x1d0] sm:$0xff] 0.0
          %375 = vst [vmem:[#allocation2 + $0x1d8] sm:$0xff] 0.0
          %376 = vst [vmem:[#allocation2 + $0x1e0] sm:$0xff] 0.0
          %377 = vst [vmem:[#allocation2 + $0x1e8] sm:$0xff] 0.0
          %378 = vst [vmem:[#allocation2 + $0x1f0] sm:$0xff] 0.0
          %379 = vst [vmem:[#allocation2 + $0x1f8] sm:$0xff] 0.0
          %380 = vst [vmem:[#allocation2 + $0x200] sm:$0xff] 0.0
          %381 = vst [vmem:[#allocation2 + $0x208] sm:$0xff] 0.0
          %382 = vst [vmem:[#allocation2 + $0x210] sm:$0xff] 0.0
          %383 = vst [vmem:[#allocation2 + $0x218] sm:$0xff] 0.0
          %384 = vst [vmem:[#allocation2 + $0x220] sm:$0xff] 0.0
          %385 = vst [vmem:[#allocation2 + $0x228] sm:$0xff] 0.0
          %386 = vst [vmem:[#allocation2 + $0x230] sm:$0xff] 0.0
          %387 = vst [vmem:[#allocation2 + $0x238] sm:$0xff] 0.0
          %388 = vst [vmem:[#allocation2 + $0x240] sm:$0xff] 0.0
          %389 = vst [vmem:[#allocation2 + $0x248] sm:$0xff] 0.0
          %390 = vst [vmem:[#allocation2 + $0x250] sm:$0xff] 0.0
          %391 = vst [vmem:[#allocation2 + $0x258] sm:$0xff] 0.0
          %392 = vst [vmem:[#allocation2 + $0x260] sm:$0xff] 0.0
          %393 = vst [vmem:[#allocation2 + $0x268] sm:$0xff] 0.0
          %394 = vst [vmem:[#allocation2 + $0x270] sm:$0xff] 0.0
          %395 = vst [vmem:[#allocation2 + $0x278] sm:$0xff] 0.0
          %396 = vst [vmem:[#allocation2 + $0x280] sm:$0xff] 0.0
          %397 = vst [vmem:[#allocation2 + $0x288] sm:$0xff] 0.0
          %398 = vst [vmem:[#allocation2 + $0x290] sm:$0xff] 0.0
          %399 = vst [vmem:[#allocation2 + $0x298] sm:$0xff] 0.0
          %400 = vst [vmem:[#allocation2 + $0x2a0] sm:$0xff] 0.0
          %401 = vst [vmem:[#allocation2 + $0x2a8] sm:$0xff] 0.0
          %402 = vst [vmem:[#allocation2 + $0x2b0] sm:$0xff] 0.0
          %403 = vst [vmem:[#allocation2 + $0x2b8] sm:$0xff] 0.0
          %404 = vst [vmem:[#allocation2 + $0x2c0] sm:$0xff] 0.0
          %405 = vst [vmem:[#allocation2 + $0x2c8] sm:$0xff] 0.0
          %406 = vst [vmem:[#allocation2 + $0x2d0] sm:$0xff] 0.0
          %407 = vst [vmem:[#allocation2 + $0x2d8] sm:$0xff] 0.0
          %408 = vst [vmem:[#allocation2 + $0x2e0] sm:$0xff] 0.0
          %409 = vst [vmem:[#allocation2 + $0x2e8] sm:$0xff] 0.0
          %410 = vst [vmem:[#allocation2 + $0x2f0] sm:$0xff] 0.0
          %411 = vst [vmem:[#allocation2 + $0x2f8] sm:$0xff] 0.0
          %412 = vst [vmem:[#allocation2 + $0x300] sm:$0xff] 0.0
          %413 = vst [vmem:[#allocation2 + $0x308] sm:$0xff] 0.0
          %414 = vst [vmem:[#allocation2 + $0x310] sm:$0xff] 0.0
          %415 = vst [vmem:[#allocation2 + $0x318] sm:$0xff] 0.0
          %416 = vst [vmem:[#allocation2 + $0x320] sm:$0xff] 0.0
          %417 = vst [vmem:[#allocation2 + $0x328] sm:$0xff] 0.0
          %418 = vst [vmem:[#allocation2 + $0x330] sm:$0xff] 0.0
          %419 = vst [vmem:[#allocation2 + $0x338] sm:$0xff] 0.0
          %420 = vst [vmem:[#allocation2 + $0x340] sm:$0xff] 0.0
          %421 = vst [vmem:[#allocation2 + $0x348] sm:$0xff] 0.0
          %422 = vst [vmem:[#allocation2 + $0x350] sm:$0xff] 0.0
          %423 = vst [vmem:[#allocation2 + $0x358] sm:$0xff] 0.0
          %424 = vst [vmem:[#allocation2 + $0x360] sm:$0xff] 0.0
          %425 = vst [vmem:[#allocation2 + $0x368] sm:$0xff] 0.0
          %426 = vst [vmem:[#allocation2 + $0x370] sm:$0xff] 0.0
          %427 = vst [vmem:[#allocation2 + $0x378] sm:$0xff] 0.0
          %428 = vst [vmem:[#allocation2 + $0x380] sm:$0xff] 0.0
          %429 = vst [vmem:[#allocation2 + $0x388] sm:$0xff] 0.0
          %430 = vst [vmem:[#allocation2 + $0x390] sm:$0xff] 0.0
          %431 = vst [vmem:[#allocation2 + $0x398] sm:$0xff] 0.0
          %432 = vst [vmem:[#allocation2 + $0x3a0] sm:$0xff] 0.0
          %433 = vst [vmem:[#allocation2 + $0x3a8] sm:$0xff] 0.0
          %434 = vst [vmem:[#allocation2 + $0x3b0] sm:$0xff] 0.0
          %435 = vst [vmem:[#allocation2 + $0x3b8] sm:$0xff] 0.0
          %436 = vst [vmem:[#allocation2 + $0x3c0] sm:$0xff] 0.0
          %437 = vst [vmem:[#allocation2 + $0x3c8] sm:$0xff] 0.0
          %438 = vst [vmem:[#allocation2 + $0x3d0] sm:$0xff] 0.0
          %439 = vst [vmem:[#allocation2 + $0x3d8] sm:$0xff] 0.0
          %440 = vst [vmem:[#allocation2 + $0x3e0] sm:$0xff] 0.0
          %441 = vst [vmem:[#allocation2 + $0x3e8] sm:$0xff] 0.0
          %442 = vst [vmem:[#allocation2 + $0x3f0] sm:$0xff] 0.0
          %443 = vst [vmem:[#allocation2 + $0x3f8] sm:$0xff] 0.0
        $region60: #{tpu_custom_call.1} parent=39 // pred_fallthru
          _
        %v444 = vld [vmem:[#allocation2] sm:$0xff]
        %v445 = vld [vmem:[#allocation2 + $0x8] sm:$0xff]
        %v446 = vld [vmem:[#allocation2 + $0x10] sm:$0xff]
        %v447 = vld [vmem:[#allocation2 + $0x18] sm:$0xff]
        %v448 = vld [vmem:[#allocation2 + $0x20] sm:$0xff]
        %v449 = vld [vmem:[#allocation2 + $0x28] sm:$0xff]
        %v450 = vld [vmem:[#allocation2 + $0x30] sm:$0xff]
        %v451 = vld [vmem:[#allocation2 + $0x38] sm:$0xff]
        %v452 = vld [vmem:[#allocation2 + $0x40] sm:$0xff]
        %v453 = vld [vmem:[#allocation2 + $0x48] sm:$0xff]
        %v454 = vld [vmem:[#allocation2 + $0x50] sm:$0xff]
        %v455 = vld [vmem:[#allocation2 + $0x58] sm:$0xff]
        %v456 = vld [vmem:[#allocation2 + $0x60] sm:$0xff]
        %v457 = vld [vmem:[#allocation2 + $0x68] sm:$0xff]
        %v458 = vld [vmem:[#allocation2 + $0x70] sm:$0xff]
        %v459 = vld [vmem:[#allocation2 + $0x78] sm:$0xff]
        %v460 = vld [vmem:[#allocation2 + $0x80] sm:$0xff]
        %v461 = vld [vmem:[#allocation2 + $0x88] sm:$0xff]
        %v462 = vld [vmem:[#allocation2 + $0x90] sm:$0xff]
        %v463 = vld [vmem:[#allocation2 + $0x98] sm:$0xff]
        %v464 = vld [vmem:[#allocation2 + $0xa0] sm:$0xff]
        %v465 = vld [vmem:[#allocation2 + $0xa8] sm:$0xff]
        %v466 = vld [vmem:[#allocation2 + $0xb0] sm:$0xff]
        %v467 = vld [vmem:[#allocation2 + $0xb8] sm:$0xff]
        %v468 = vld [vmem:[#allocation2 + $0xc0] sm:$0xff]
        %v469 = vld [vmem:[#allocation2 + $0xc8] sm:$0xff]
        %v470 = vld [vmem:[#allocation2 + $0xd0] sm:$0xff]
        %v471 = vld [vmem:[#allocation2 + $0xd8] sm:$0xff]
        %v472 = vld [vmem:[#allocation2 + $0xe0] sm:$0xff]
        %v473 = vld [vmem:[#allocation2 + $0xe8] sm:$0xff]
        %v474 = vld [vmem:[#allocation2 + $0xf0] sm:$0xff]
        %v475 = vld [vmem:[#allocation2 + $0xf8] sm:$0xff]
        %v476 = vld [vmem:[#allocation2 + $0x100] sm:$0xff]
        %v477 = vld [vmem:[#allocation2 + $0x108] sm:$0xff]
        %v478 = vld [vmem:[#allocation2 + $0x110] sm:$0xff]
        %v479 = vld [vmem:[#allocation2 + $0x118] sm:$0xff]
        %v480 = vld [vmem:[#allocation2 + $0x120] sm:$0xff]
        %v481 = vld [vmem:[#allocation2 + $0x128] sm:$0xff]
        %v482 = vld [vmem:[#allocation2 + $0x130] sm:$0xff]
        %v483 = vld [vmem:[#allocation2 + $0x138] sm:$0xff]
        %v484 = vld [vmem:[#allocation2 + $0x140] sm:$0xff]
        %v485 = vld [vmem:[#allocation2 + $0x148] sm:$0xff]
        %v486 = vld [vmem:[#allocation2 + $0x150] sm:$0xff]
        %v487 = vld [vmem:[#allocation2 + $0x158] sm:$0xff]
        %v488 = vld [vmem:[#allocation2 + $0x160] sm:$0xff]
        %v489 = vld [vmem:[#allocation2 + $0x168] sm:$0xff]
        %v490 = vld [vmem:[#allocation2 + $0x170] sm:$0xff]
        %v491 = vld [vmem:[#allocation2 + $0x178] sm:$0xff]
        %v492 = vld [vmem:[#allocation2 + $0x180] sm:$0xff]
        %v493 = vld [vmem:[#allocation2 + $0x188] sm:$0xff]
        %v494 = vld [vmem:[#allocation2 + $0x190] sm:$0xff]
        %v495 = vld [vmem:[#allocation2 + $0x198] sm:$0xff]
        %v496 = vld [vmem:[#allocation2 + $0x1a0] sm:$0xff]
        %v497 = vld [vmem:[#allocation2 + $0x1a8] sm:$0xff]
        %v498 = vld [vmem:[#allocation2 + $0x1b0] sm:$0xff]
        %v499 = vld [vmem:[#allocation2 + $0x1b8] sm:$0xff]
        %v500 = vld [vmem:[#allocation2 + $0x1c0] sm:$0xff]
        %v501 = vld [vmem:[#allocation2 + $0x1c8] sm:$0xff]
        %v502 = vld [vmem:[#allocation2 + $0x1d0] sm:$0xff]
        %v503 = vld [vmem:[#allocation2 + $0x1d8] sm:$0xff]
        %v504 = vld [vmem:[#allocation2 + $0x1e0] sm:$0xff]
        %v505 = vld [vmem:[#allocation2 + $0x1e8] sm:$0xff]
        %v506 = vld [vmem:[#allocation2 + $0x1f0] sm:$0xff]
        %v507 = vld [vmem:[#allocation2 + $0x1f8] sm:$0xff]
        %v508 = vld [vmem:[#allocation2 + $0x200] sm:$0xff]
        %v509 = vld [vmem:[#allocation2 + $0x208] sm:$0xff]
        %v510 = vld [vmem:[#allocation2 + $0x210] sm:$0xff]
        %v511 = vld [vmem:[#allocation2 + $0x218] sm:$0xff]
        %v512 = vld [vmem:[#allocation2 + $0x220] sm:$0xff]
        %v513 = vld [vmem:[#allocation2 + $0x228] sm:$0xff]
        %v514 = vld [vmem:[#allocation2 + $0x230] sm:$0xff]
        %v515 = vld [vmem:[#allocation2 + $0x238] sm:$0xff]
        %v516 = vld [vmem:[#allocation2 + $0x240] sm:$0xff]
        %v517 = vld [vmem:[#allocation2 + $0x248] sm:$0xff]
        %v518 = vld [vmem:[#allocation2 + $0x250] sm:$0xff]
        %v519 = vld [vmem:[#allocation2 + $0x258] sm:$0xff]
        %v520 = vld [vmem:[#allocation2 + $0x260] sm:$0xff]
        %v521 = vld [vmem:[#allocation2 + $0x268] sm:$0xff]
        %v522 = vld [vmem:[#allocation2 + $0x270] sm:$0xff]
        %v523 = vld [vmem:[#allocation2 + $0x278] sm:$0xff]
        %v524 = vld [vmem:[#allocation2 + $0x280] sm:$0xff]
        %v525 = vld [vmem:[#allocation2 + $0x288] sm:$0xff]
        %v526 = vld [vmem:[#allocation2 + $0x290] sm:$0xff]
        %v527 = vld [vmem:[#allocation2 + $0x298] sm:$0xff]
        %v528 = vld [vmem:[#allocation2 + $0x2a0] sm:$0xff]
        %v529 = vld [vmem:[#allocation2 + $0x2a8] sm:$0xff]
        %v530 = vld [vmem:[#allocation2 + $0x2b0] sm:$0xff]
        %v531 = vld [vmem:[#allocation2 + $0x2b8] sm:$0xff]
        %v532 = vld [vmem:[#allocation2 + $0x2c0] sm:$0xff]
        %v533 = vld [vmem:[#allocation2 + $0x2c8] sm:$0xff]
        %v534 = vld [vmem:[#allocation2 + $0x2d0] sm:$0xff]
        %v535 = vld [vmem:[#allocation2 + $0x2d8] sm:$0xff]
        %v536 = vld [vmem:[#allocation2 + $0x2e0] sm:$0xff]
        %v537 = vld [vmem:[#allocation2 + $0x2e8] sm:$0xff]
        %v538 = vld [vmem:[#allocation2 + $0x2f0] sm:$0xff]
        %v539 = vld [vmem:[#allocation2 + $0x2f8] sm:$0xff]
        %v540 = vld [vmem:[#allocation2 + $0x300] sm:$0xff]
        %v541 = vld [vmem:[#allocation2 + $0x308] sm:$0xff]
        %v542 = vld [vmem:[#allocation2 + $0x310] sm:$0xff]
        %v543 = vld [vmem:[#allocation2 + $0x318] sm:$0xff]
        %v544 = vld [vmem:[#allocation2 + $0x320] sm:$0xff]
        %v545 = vld [vmem:[#allocation2 + $0x328] sm:$0xff]
        %v546 = vld [vmem:[#allocation2 + $0x330] sm:$0xff]
        %v547 = vld [vmem:[#allocation2 + $0x338] sm:$0xff]
        %v548 = vld [vmem:[#allocation2 + $0x340] sm:$0xff]
        %v549 = vld [vmem:[#allocation2 + $0x348] sm:$0xff]
        %v550 = vld [vmem:[#allocation2 + $0x350] sm:$0xff]
        %v551 = vld [vmem:[#allocation2 + $0x358] sm:$0xff]
        %v552 = vld [vmem:[#allocation2 + $0x360] sm:$0xff]
        %v553 = vld [vmem:[#allocation2 + $0x368] sm:$0xff]
        %v554 = vld [vmem:[#allocation2 + $0x370] sm:$0xff]
        %v555 = vld [vmem:[#allocation2 + $0x378] sm:$0xff]
        %v556 = vld [vmem:[#allocation2 + $0x380] sm:$0xff]
        %v557 = vld [vmem:[#allocation2 + $0x388] sm:$0xff]
        %v558 = vld [vmem:[#allocation2 + $0x390] sm:$0xff]
        %v559 = vld [vmem:[#allocation2 + $0x398] sm:$0xff]
        %v560 = vld [vmem:[#allocation2 + $0x3a0] sm:$0xff]
        %v561 = vld [vmem:[#allocation2 + $0x3a8] sm:$0xff]
        %v562 = vld [vmem:[#allocation2 + $0x3b0] sm:$0xff]
        %v563 = vld [vmem:[#allocation2 + $0x3b8] sm:$0xff]
        %v564 = vld [vmem:[#allocation2 + $0x3c0] sm:$0xff]
        %v565 = vld [vmem:[#allocation2 + $0x3c8] sm:$0xff]
        %v566 = vld [vmem:[#allocation2 + $0x3d0] sm:$0xff]
        %v567 = vld [vmem:[#allocation2 + $0x3d8] sm:$0xff]
        %v568 = vld [vmem:[#allocation2 + $0x3e0] sm:$0xff]
        %v569 = vld [vmem:[#allocation2 + $0x3e8] sm:$0xff]
        %v570 = vld [vmem:[#allocation2 + $0x3f0] sm:$0xff]
        %v571 = vld [vmem:[#allocation2 + $0x3f8] sm:$0xff]
        %v572 = vld [vmem:[%s270] sm:$0xff]
        %v573 = vld [vmem:[%s270 + $0x8] sm:$0xff]
        %v574 = vld [vmem:[%s270 + $0x10] sm:$0xff]
        %v575 = vld [vmem:[%s270 + $0x18] sm:$0xff]
        %v576 = vld [vmem:[%s270 + $0x20] sm:$0xff]
        %v577 = vld [vmem:[%s270 + $0x28] sm:$0xff]
        %v578 = vld [vmem:[%s270 + $0x30] sm:$0xff]
        %v579 = vld [vmem:[%s270 + $0x38] sm:$0xff]
        %v580 = vld [vmem:[%s270 + $0x40] sm:$0xff]
        %v581 = vld [vmem:[%s270 + $0x48] sm:$0xff]
        %v582 = vld [vmem:[%s270 + $0x50] sm:$0xff]
        %v583 = vld [vmem:[%s270 + $0x58] sm:$0xff]
        %v584 = vld [vmem:[%s270 + $0x60] sm:$0xff]
        %v585 = vld [vmem:[%s270 + $0x68] sm:$0xff]
        %v586 = vld [vmem:[%s270 + $0x70] sm:$0xff]
        %v587 = vld [vmem:[%s270 + $0x78] sm:$0xff]
        %v588 = vld [vmem:[%s270 + $0x80] sm:$0xff]
        %v589 = vld [vmem:[%s270 + $0x88] sm:$0xff]
        %v590 = vld [vmem:[%s270 + $0x90] sm:$0xff]
        %v591 = vld [vmem:[%s270 + $0x98] sm:$0xff]
        %v592 = vld [vmem:[%s270 + $0xa0] sm:$0xff]
        %v593 = vld [vmem:[%s270 + $0xa8] sm:$0xff]
        %v594 = vld [vmem:[%s270 + $0xb0] sm:$0xff]
        %v595 = vld [vmem:[%s270 + $0xb8] sm:$0xff]
        %v596 = vld [vmem:[%s270 + $0xc0] sm:$0xff]
        %v597 = vld [vmem:[%s270 + $0xc8] sm:$0xff]
        %v598 = vld [vmem:[%s270 + $0xd0] sm:$0xff]
        %v599 = vld [vmem:[%s270 + $0xd8] sm:$0xff]
        %v600 = vld [vmem:[%s270 + $0xe0] sm:$0xff]
        %v601 = vld [vmem:[%s270 + $0xe8] sm:$0xff]
        %v602 = vld [vmem:[%s270 + $0xf0] sm:$0xff]
        %v603 = vld [vmem:[%s270 + $0xf8] sm:$0xff]
        %v604 = vld [vmem:[#allocation6] sm:$0xff]
        %v605 = vld [vmem:[#allocation6 + $0x8] sm:$0xff]
        %v606 = vld [vmem:[#allocation6 + $0x10] sm:$0xff]
        %v607 = vld [vmem:[#allocation6 + $0x18] sm:$0xff]
        %v608 = vld [vmem:[#allocation6 + $0x20] sm:$0xff]
        %v609 = vld [vmem:[#allocation6 + $0x28] sm:$0xff]
        %v610 = vld [vmem:[#allocation6 + $0x30] sm:$0xff]
        %v611 = vld [vmem:[#allocation6 + $0x38] sm:$0xff]
        %v612 = vld [vmem:[#allocation6 + $0x40] sm:$0xff]
        %v613 = vld [vmem:[#allocation6 + $0x48] sm:$0xff]
        %v614 = vld [vmem:[#allocation6 + $0x50] sm:$0xff]
        %v615 = vld [vmem:[#allocation6 + $0x58] sm:$0xff]
        %v616 = vld [vmem:[#allocation6 + $0x60] sm:$0xff]
        %v617 = vld [vmem:[#allocation6 + $0x68] sm:$0xff]
        %v618 = vld [vmem:[#allocation6 + $0x70] sm:$0xff]
        %v619 = vld [vmem:[#allocation6 + $0x78] sm:$0xff]
        %v620 = vld [vmem:[#allocation6 + $0x80] sm:$0xff]
        %v621 = vld [vmem:[#allocation6 + $0x88] sm:$0xff]
        %v622 = vld [vmem:[#allocation6 + $0x90] sm:$0xff]
        %v623 = vld [vmem:[#allocation6 + $0x98] sm:$0xff]
        %v624 = vld [vmem:[#allocation6 + $0xa0] sm:$0xff]
        %v625 = vld [vmem:[#allocation6 + $0xa8] sm:$0xff]
        %v626 = vld [vmem:[#allocation6 + $0xb0] sm:$0xff]
        %v627 = vld [vmem:[#allocation6 + $0xb8] sm:$0xff]
        %v628 = vld [vmem:[#allocation6 + $0xc0] sm:$0xff]
        %v629 = vld [vmem:[#allocation6 + $0xc8] sm:$0xff]
        %v630 = vld [vmem:[#allocation6 + $0xd0] sm:$0xff]
        %v631 = vld [vmem:[#allocation6 + $0xd8] sm:$0xff]
        %v632 = vld [vmem:[#allocation6 + $0xe0] sm:$0xff]
        %v633 = vld [vmem:[#allocation6 + $0xe8] sm:$0xff]
        %v634 = vld [vmem:[#allocation6 + $0xf0] sm:$0xff]
        %v635 = vld [vmem:[#allocation6 + $0xf8] sm:$0xff]
        %v636 = vld [vmem:[#allocation6 + $0x100] sm:$0xff]
        %v637 = vld [vmem:[#allocation6 + $0x108] sm:$0xff]
        %v638 = vld [vmem:[#allocation6 + $0x110] sm:$0xff]
        %v639 = vld [vmem:[#allocation6 + $0x118] sm:$0xff]
        %v640 = vld [vmem:[#allocation6 + $0x120] sm:$0xff]
        %v641 = vld [vmem:[#allocation6 + $0x128] sm:$0xff]
        %v642 = vld [vmem:[#allocation6 + $0x130] sm:$0xff]
        %v643 = vld [vmem:[#allocation6 + $0x138] sm:$0xff]
        %v644 = vld [vmem:[#allocation6 + $0x140] sm:$0xff]
        %v645 = vld [vmem:[#allocation6 + $0x148] sm:$0xff]
        %v646 = vld [vmem:[#allocation6 + $0x150] sm:$0xff]
        %v647 = vld [vmem:[#allocation6 + $0x158] sm:$0xff]
        %v648 = vld [vmem:[#allocation6 + $0x160] sm:$0xff]
        %v649 = vld [vmem:[#allocation6 + $0x168] sm:$0xff]
        %v650 = vld [vmem:[#allocation6 + $0x170] sm:$0xff]
        %v651 = vld [vmem:[#allocation6 + $0x178] sm:$0xff]
        %v652 = vld [vmem:[#allocation6 + $0x180] sm:$0xff]
        %v653 = vld [vmem:[#allocation6 + $0x188] sm:$0xff]
        %v654 = vld [vmem:[#allocation6 + $0x190] sm:$0xff]
        %v655 = vld [vmem:[#allocation6 + $0x198] sm:$0xff]
        %v656 = vld [vmem:[#allocation6 + $0x1a0] sm:$0xff]
        %v657 = vld [vmem:[#allocation6 + $0x1a8] sm:$0xff]
        %v658 = vld [vmem:[#allocation6 + $0x1b0] sm:$0xff]
        %v659 = vld [vmem:[#allocation6 + $0x1b8] sm:$0xff]
        %v660 = vld [vmem:[#allocation6 + $0x1c0] sm:$0xff]
        %v661 = vld [vmem:[#allocation6 + $0x1c8] sm:$0xff]
        %v662 = vld [vmem:[#allocation6 + $0x1d0] sm:$0xff]
        %v663 = vld [vmem:[#allocation6 + $0x1d8] sm:$0xff]
        %v664 = vld [vmem:[#allocation6 + $0x1e0] sm:$0xff]
        %v665 = vld [vmem:[#allocation6 + $0x1e8] sm:$0xff]
        %v666 = vld [vmem:[#allocation6 + $0x1f0] sm:$0xff]
        %v667 = vld [vmem:[#allocation6 + $0x1f8] sm:$0xff]
        %668 = vmatprep.subr.mxu0 %v665
        %669 = vmatpush1.msra.mxu0 %v664
        %670 = vmatprep.subr.mxu0 %v661
        %671 = vmatpush1.msra.mxu0 %v660
        %672 = vmatprep.subr.mxu0 %v657
        %673 = vmatpush1.msra.mxu0 %v656
        %674 = vmatprep.subr.mxu0 %v653
        %675 = vmatpush1.msra.mxu0 %v652
        %676 = vmatprep.subr.mxu0 %v649
        %677 = vmatpush1.msra.mxu0 %v648
        %678 = vmatprep.subr.mxu0 %v645
        %679 = vmatpush1.msra.mxu0 %v644
        %680 = vmatprep.subr.mxu0 %v641
        %681 = vmatpush1.msra.mxu0 %v640
        %682 = vmatprep.subr.mxu0 %v637
        %683 = vmatpush1.msra.mxu0 %v636
        %684 = vmatprep.subr.mxu0 %v633
        %685 = vmatpush1.msra.mxu0 %v632
        %686 = vmatprep.subr.mxu0 %v629
        %687 = vmatpush1.msra.mxu0 %v628
        %688 = vmatprep.subr.mxu0 %v625
        %689 = vmatpush1.msra.mxu0 %v624
        %690 = vmatprep.subr.mxu0 %v621
        %691 = vmatpush1.msra.mxu0 %v620
        %692 = vmatprep.subr.mxu0 %v617
        %693 = vmatpush1.msra.mxu0 %v616
        %694 = vmatprep.subr.mxu0 %v613
        %695 = vmatpush1.msra.mxu0 %v612
        %696 = vmatprep.subr.mxu0 %v609
        %697 = vmatpush1.msra.mxu0 %v608
        %698 = vmatprep.subr.mxu0 %v605
        %699 = vmatpush1.msra.mxu0 %v604
        %700 = vmatprep.subr.mxu0 0.0
        %701 = vmatpush2.msra.mxu0 0.0
        %702 = vmatprep.subr.mxu0 0.0
        %703 = vmatpush2.msra.mxu0 0.0
        %704 = vmatprep.subr.mxu0 0.0
        %705 = vmatpush2.msra.mxu0 0.0
        %706 = vmatprep.subr.mxu0 0.0
        %707 = vmatpush2.msra.mxu0 0.0
        %708 = vmatprep.subr.mxu0 0.0
        %709 = vmatpush2.msra.mxu0 0.0
        %710 = vmatprep.subr.mxu0 0.0
        %711 = vmatpush2.msra.mxu0 0.0
        %712 = vmatprep.subr.mxu0 0.0
        %713 = vmatpush2.msra.mxu0 0.0
        %714 = vmatprep.subr.mxu0 0.0
        %715 = vmatpush2.msra.mxu0 0.0
        %716 = vmatprep.subr.mxu0 0.0
        %717 = vmatpush2.msra.mxu0 0.0
        %718 = vmatprep.subr.mxu0 0.0
        %719 = vmatpush2.msra.mxu0 0.0
        %720 = vmatprep.subr.mxu0 0.0
        %721 = vmatpush2.msra.mxu0 0.0
        %722 = vmatprep.subr.mxu0 0.0
        %723 = vmatpush2.msra.mxu0 0.0
        %724 = vmatprep.subr.mxu0 0.0
        %725 = vmatpush2.msra.mxu0 0.0
        %726 = vmatprep.subr.mxu0 0.0
        %727 = vmatpush2.msra.mxu0 0.0
        %728 = vmatprep.subr.mxu0 0.0
        %729 = vmatpush2.msra.mxu0 0.0
        %730 = vmatprep.subr.mxu0 0.0
        %731 = vmatpush2.msra.mxu0 0.0
        %732 = vmatprep.mubr.f32.mxu0 0.0
        %733 = vmatmul.mubr.f32.gmra.mxu0 %v572
        %v734 = vpop.f32.mrf.mxu0
        %v735 = vadd.f32 0.0, %v734
        %v736 = vpop.f32.mrf.mxu0
        %v737 = vadd.f32 0.0, %v736
        %738 = vmatprep.mubr.f32.mxu0 0.0
        %739 = vmatmul.mubr.f32.gmra.mxu0 %v573
        %v740 = vpop.f32.mrf.mxu0
        %v741 = vadd.f32 0.0, %v740
        %v742 = vpop.f32.mrf.mxu0
        %v743 = vadd.f32 0.0, %v742
        %744 = vmatprep.mubr.f32.mxu0 0.0
        %745 = vmatmul.mubr.f32.gmra.mxu0 %v574
        %v746 = vpop.f32.mrf.mxu0
        %v747 = vadd.f32 0.0, %v746
        %v748 = vpop.f32.mrf.mxu0
        %v749 = vadd.f32 0.0, %v748
        %750 = vmatprep.mubr.f32.mxu0 0.0
        %751 = vmatmul.mubr.f32.gmra.mxu0 %v575
        %v752 = vpop.f32.mrf.mxu0
        %v753 = vadd.f32 0.0, %v752
        %v754 = vpop.f32.mrf.mxu0
        %v755 = vadd.f32 0.0, %v754
        %756 = vmatprep.mubr.f32.mxu0 0.0
        %757 = vmatmul.mubr.f32.gmra.mxu0 %v576
        %v758 = vpop.f32.mrf.mxu0
        %v759 = vadd.f32 0.0, %v758
        %v760 = vpop.f32.mrf.mxu0
        %v761 = vadd.f32 0.0, %v760
        %762 = vmatprep.mubr.f32.mxu0 0.0
        %763 = vmatmul.mubr.f32.gmra.mxu0 %v577
        %v764 = vpop.f32.mrf.mxu0
        %v765 = vadd.f32 0.0, %v764
        %v766 = vpop.f32.mrf.mxu0
        %v767 = vadd.f32 0.0, %v766
        %768 = vmatprep.mubr.f32.mxu0 0.0
        %769 = vmatmul.mubr.f32.gmra.mxu0 %v578
        %v770 = vpop.f32.mrf.mxu0
        %v771 = vadd.f32 0.0, %v770
        %v772 = vpop.f32.mrf.mxu0
        %v773 = vadd.f32 0.0, %v772
        %774 = vmatprep.mubr.f32.mxu0 0.0
        %775 = vmatmul.mubr.f32.gmra.mxu0 %v579
        %v776 = vpop.f32.mrf.mxu0
        %v777 = vadd.f32 0.0, %v776
        %v778 = vpop.f32.mrf.mxu0
        %v779 = vadd.f32 0.0, %v778
        %780 = vmatprep.mubr.f32.mxu0 0.0
        %781 = vmatmul.mubr.f32.gmra.mxu0 %v580
        %v782 = vpop.f32.mrf.mxu0
        %v783 = vadd.f32 0.0, %v782
        %v784 = vpop.f32.mrf.mxu0
        %v785 = vadd.f32 0.0, %v784
        %786 = vmatprep.mubr.f32.mxu0 0.0
        %787 = vmatmul.mubr.f32.gmra.mxu0 %v581
        %v788 = vpop.f32.mrf.mxu0
        %v789 = vadd.f32 0.0, %v788
        %v790 = vpop.f32.mrf.mxu0
        %v791 = vadd.f32 0.0, %v790
        %792 = vmatprep.mubr.f32.mxu0 0.0
        %793 = vmatmul.mubr.f32.gmra.mxu0 %v582
        %v794 = vpop.f32.mrf.mxu0
        %v795 = vadd.f32 0.0, %v794
        %v796 = vpop.f32.mrf.mxu0
        %v797 = vadd.f32 0.0, %v796
        %798 = vmatprep.mubr.f32.mxu0 0.0
        %799 = vmatmul.mubr.f32.gmra.mxu0 %v583
        %v800 = vpop.f32.mrf.mxu0
        %v801 = vadd.f32 0.0, %v800
        %v802 = vpop.f32.mrf.mxu0
        %v803 = vadd.f32 0.0, %v802
        %804 = vmatprep.mubr.f32.mxu0 0.0
        %805 = vmatmul.mubr.f32.gmra.mxu0 %v584
        %v806 = vpop.f32.mrf.mxu0
        %v807 = vadd.f32 0.0, %v806
        %v808 = vpop.f32.mrf.mxu0
        %v809 = vadd.f32 0.0, %v808
        %810 = vmatprep.mubr.f32.mxu0 0.0
        %811 = vmatmul.mubr.f32.gmra.mxu0 %v585
        %v812 = vpop.f32.mrf.mxu0
        %v813 = vadd.f32 0.0, %v812
        %v814 = vpop.f32.mrf.mxu0
        %v815 = vadd.f32 0.0, %v814
        %816 = vmatprep.mubr.f32.mxu0 0.0
        %817 = vmatmul.mubr.f32.gmra.mxu0 %v586
        %v818 = vpop.f32.mrf.mxu0
        %v819 = vadd.f32 0.0, %v818
        %v820 = vpop.f32.mrf.mxu0
        %v821 = vadd.f32 0.0, %v820
        %822 = vmatprep.mubr.f32.mxu0 0.0
        %823 = vmatmul.mubr.f32.gmra.mxu0 %v587
        %v824 = vpop.f32.mrf.mxu0
        %v825 = vadd.f32 0.0, %v824
        %v826 = vpop.f32.mrf.mxu0
        %v827 = vadd.f32 0.0, %v826
        %828 = vmatprep.mubr.f32.mxu0 0.0
        %829 = vmatmul.mubr.f32.gmra.mxu0 %v588
        %v830 = vpop.f32.mrf.mxu0
        %v831 = vadd.f32 0.0, %v830
        %v832 = vpop.f32.mrf.mxu0
        %v833 = vadd.f32 0.0, %v832
        %834 = vmatprep.mubr.f32.mxu0 0.0
        %835 = vmatmul.mubr.f32.gmra.mxu0 %v589
        %v836 = vpop.f32.mrf.mxu0
        %v837 = vadd.f32 0.0, %v836
        %v838 = vpop.f32.mrf.mxu0
        %v839 = vadd.f32 0.0, %v838
        %840 = vmatprep.mubr.f32.mxu0 0.0
        %841 = vmatmul.mubr.f32.gmra.mxu0 %v590
        %v842 = vpop.f32.mrf.mxu0
        %v843 = vadd.f32 0.0, %v842
        %v844 = vpop.f32.mrf.mxu0
        %v845 = vadd.f32 0.0, %v844
        %846 = vmatprep.mubr.f32.mxu0 0.0
        %847 = vmatmul.mubr.f32.gmra.mxu0 %v591
        %v848 = vpop.f32.mrf.mxu0
        %v849 = vadd.f32 0.0, %v848
        %v850 = vpop.f32.mrf.mxu0
        %v851 = vadd.f32 0.0, %v850
        %852 = vmatprep.mubr.f32.mxu0 0.0
        %853 = vmatmul.mubr.f32.gmra.mxu0 %v592
        %v854 = vpop.f32.mrf.mxu0
        %v855 = vadd.f32 0.0, %v854
        %v856 = vpop.f32.mrf.mxu0
        %v857 = vadd.f32 0.0, %v856
        %858 = vmatprep.mubr.f32.mxu0 0.0
        %859 = vmatmul.mubr.f32.gmra.mxu0 %v593
        %v860 = vpop.f32.mrf.mxu0
        %v861 = vadd.f32 0.0, %v860
        %v862 = vpop.f32.mrf.mxu0
        %v863 = vadd.f32 0.0, %v862
        %864 = vmatprep.mubr.f32.mxu0 0.0
        %865 = vmatmul.mubr.f32.gmra.mxu0 %v594
        %v866 = vpop.f32.mrf.mxu0
        %v867 = vadd.f32 0.0, %v866
        %v868 = vpop.f32.mrf.mxu0
        %v869 = vadd.f32 0.0, %v868
        %870 = vmatprep.mubr.f32.mxu0 0.0
        %871 = vmatmul.mubr.f32.gmra.mxu0 %v595
        %v872 = vpop.f32.mrf.mxu0
        %v873 = vadd.f32 0.0, %v872
        %v874 = vpop.f32.mrf.mxu0
        %v875 = vadd.f32 0.0, %v874
        %876 = vmatprep.mubr.f32.mxu0 0.0
        %877 = vmatmul.mubr.f32.gmra.mxu0 %v596
        %v878 = vpop.f32.mrf.mxu0
        %v879 = vadd.f32 0.0, %v878
        %v880 = vpop.f32.mrf.mxu0
        %v881 = vadd.f32 0.0, %v880
        %882 = vmatprep.mubr.f32.mxu0 0.0
        %883 = vmatmul.mubr.f32.gmra.mxu0 %v597
        %v884 = vpop.f32.mrf.mxu0
        %v885 = vadd.f32 0.0, %v884
        %v886 = vpop.f32.mrf.mxu0
        %v887 = vadd.f32 0.0, %v886
        %888 = vmatprep.mubr.f32.mxu0 0.0
        %889 = vmatmul.mubr.f32.gmra.mxu0 %v598
        %v890 = vpop.f32.mrf.mxu0
        %v891 = vadd.f32 0.0, %v890
        %v892 = vpop.f32.mrf.mxu0
        %v893 = vadd.f32 0.0, %v892
        %894 = vmatprep.mubr.f32.mxu0 0.0
        %895 = vmatmul.mubr.f32.gmra.mxu0 %v599
        %v896 = vpop.f32.mrf.mxu0
        %v897 = vadd.f32 0.0, %v896
        %v898 = vpop.f32.mrf.mxu0
        %v899 = vadd.f32 0.0, %v898
        %900 = vmatprep.mubr.f32.mxu0 0.0
        %901 = vmatmul.mubr.f32.gmra.mxu0 %v600
        %v902 = vpop.f32.mrf.mxu0
        %v903 = vadd.f32 0.0, %v902
        %v904 = vpop.f32.mrf.mxu0
        %v905 = vadd.f32 0.0, %v904
        %906 = vmatprep.mubr.f32.mxu0 0.0
        %907 = vmatmul.mubr.f32.gmra.mxu0 %v601
        %v908 = vpop.f32.mrf.mxu0
        %v909 = vadd.f32 0.0, %v908
        %v910 = vpop.f32.mrf.mxu0
        %v911 = vadd.f32 0.0, %v910
        %912 = vmatprep.mubr.f32.mxu0 0.0
        %913 = vmatmul.mubr.f32.gmra.mxu0 %v602
        %v914 = vpop.f32.mrf.mxu0
        %v915 = vadd.f32 0.0, %v914
        %v916 = vpop.f32.mrf.mxu0
        %v917 = vadd.f32 0.0, %v916
        %918 = vmatprep.mubr.f32.mxu0 0.0
        %919 = vmatmul.mubr.f32.gmra.mxu0 %v603
        %v920 = vpop.f32.mrf.mxu0
        %v921 = vadd.f32 0.0, %v920
        %v922 = vpop.f32.mrf.mxu0
        %v923 = vadd.f32 0.0, %v922
        %924 = vdwg.mxu0
        %925 = vmatprep.subr.mxu0 %v667
        %926 = vmatpush1.msra.mxu0 %v666
        %927 = vmatprep.subr.mxu0 %v663
        %928 = vmatpush1.msra.mxu0 %v662
        %929 = vmatprep.subr.mxu0 %v659
        %930 = vmatpush1.msra.mxu0 %v658
        %931 = vmatprep.subr.mxu0 %v655
        %932 = vmatpush1.msra.mxu0 %v654
        %933 = vmatprep.subr.mxu0 %v651
        %934 = vmatpush1.msra.mxu0 %v650
        %935 = vmatprep.subr.mxu0 %v647
        %936 = vmatpush1.msra.mxu0 %v646
        %937 = vmatprep.subr.mxu0 %v643
        %938 = vmatpush1.msra.mxu0 %v642
        %939 = vmatprep.subr.mxu0 %v639
        %940 = vmatpush1.msra.mxu0 %v638
        %941 = vmatprep.subr.mxu0 %v635
        %942 = vmatpush1.msra.mxu0 %v634
        %943 = vmatprep.subr.mxu0 %v631
        %944 = vmatpush1.msra.mxu0 %v630
        %945 = vmatprep.subr.mxu0 %v627
        %946 = vmatpush1.msra.mxu0 %v626
        %947 = vmatprep.subr.mxu0 %v623
        %948 = vmatpush1.msra.mxu0 %v622
        %949 = vmatprep.subr.mxu0 %v619
        %950 = vmatpush1.msra.mxu0 %v618
        %951 = vmatprep.subr.mxu0 %v615
        %952 = vmatpush1.msra.mxu0 %v614
        %953 = vmatprep.subr.mxu0 %v611
        %954 = vmatpush1.msra.mxu0 %v610
        %955 = vmatprep.subr.mxu0 %v607
        %956 = vmatpush1.msra.mxu0 %v606
        %957 = vmatprep.subr.mxu0 0.0
        %958 = vmatpush2.msra.mxu0 0.0
        %959 = vmatprep.subr.mxu0 0.0
        %960 = vmatpush2.msra.mxu0 0.0
        %961 = vmatprep.subr.mxu0 0.0
        %962 = vmatpush2.msra.mxu0 0.0
        %963 = vmatprep.subr.mxu0 0.0
        %964 = vmatpush2.msra.mxu0 0.0
        %965 = vmatprep.subr.mxu0 0.0
        %966 = vmatpush2.msra.mxu0 0.0
        %967 = vmatprep.subr.mxu0 0.0
        %968 = vmatpush2.msra.mxu0 0.0
        %969 = vmatprep.subr.mxu0 0.0
        %970 = vmatpush2.msra.mxu0 0.0
        %971 = vmatprep.subr.mxu0 0.0
        %972 = vmatpush2.msra.mxu0 0.0
        %973 = vmatprep.subr.mxu0 0.0
        %974 = vmatpush2.msra.mxu0 0.0
        %975 = vmatprep.subr.mxu0 0.0
        %976 = vmatpush2.msra.mxu0 0.0
        %977 = vmatprep.subr.mxu0 0.0
        %978 = vmatpush2.msra.mxu0 0.0
        %979 = vmatprep.subr.mxu0 0.0
        %980 = vmatpush2.msra.mxu0 0.0
        %981 = vmatprep.subr.mxu0 0.0
        %982 = vmatpush2.msra.mxu0 0.0
        %983 = vmatprep.subr.mxu0 0.0
        %984 = vmatpush2.msra.mxu0 0.0
        %985 = vmatprep.subr.mxu0 0.0
        %986 = vmatpush2.msra.mxu0 0.0
        %987 = vmatprep.subr.mxu0 0.0
        %988 = vmatpush2.msra.mxu0 0.0
        %989 = vmatprep.mubr.f32.mxu0 0.0
        %990 = vmatmul.mubr.f32.gmra.mxu0 %v572
        %v991 = vpop.f32.mrf.mxu0
        %v992 = vadd.f32 0.0, %v991
        %v993 = vpop.f32.mrf.mxu0
        %v994 = vadd.f32 0.0, %v993
        %995 = vmatprep.mubr.f32.mxu0 0.0
        %996 = vmatmul.mubr.f32.gmra.mxu0 %v573
        %v997 = vpop.f32.mrf.mxu0
        %v998 = vadd.f32 0.0, %v997
        %v999 = vpop.f32.mrf.mxu0
        %v1000 = vadd.f32 0.0, %v999
        %1001 = vmatprep.mubr.f32.mxu0 0.0
        %1002 = vmatmul.mubr.f32.gmra.mxu0 %v574
        %v1003 = vpop.f32.mrf.mxu0
        %v1004 = vadd.f32 0.0, %v1003
        %v1005 = vpop.f32.mrf.mxu0
        %v1006 = vadd.f32 0.0, %v1005
        %1007 = vmatprep.mubr.f32.mxu0 0.0
        %1008 = vmatmul.mubr.f32.gmra.mxu0 %v575
        %v1009 = vpop.f32.mrf.mxu0
        %v1010 = vadd.f32 0.0, %v1009
        %v1011 = vpop.f32.mrf.mxu0
        %v1012 = vadd.f32 0.0, %v1011
        %1013 = vmatprep.mubr.f32.mxu0 0.0
        %1014 = vmatmul.mubr.f32.gmra.mxu0 %v576
        %v1015 = vpop.f32.mrf.mxu0
        %v1016 = vadd.f32 0.0, %v1015
        %v1017 = vpop.f32.mrf.mxu0
        %v1018 = vadd.f32 0.0, %v1017
        %1019 = vmatprep.mubr.f32.mxu0 0.0
        %1020 = vmatmul.mubr.f32.gmra.mxu0 %v577
        %v1021 = vpop.f32.mrf.mxu0
        %v1022 = vadd.f32 0.0, %v1021
        %v1023 = vpop.f32.mrf.mxu0
        %v1024 = vadd.f32 0.0, %v1023
        %1025 = vmatprep.mubr.f32.mxu0 0.0
        %1026 = vmatmul.mubr.f32.gmra.mxu0 %v578
        %v1027 = vpop.f32.mrf.mxu0
        %v1028 = vadd.f32 0.0, %v1027
        %v1029 = vpop.f32.mrf.mxu0
        %v1030 = vadd.f32 0.0, %v1029
        %1031 = vmatprep.mubr.f32.mxu0 0.0
        %1032 = vmatmul.mubr.f32.gmra.mxu0 %v579
        %v1033 = vpop.f32.mrf.mxu0
        %v1034 = vadd.f32 0.0, %v1033
        %v1035 = vpop.f32.mrf.mxu0
        %v1036 = vadd.f32 0.0, %v1035
        %1037 = vmatprep.mubr.f32.mxu0 0.0
        %1038 = vmatmul.mubr.f32.gmra.mxu0 %v580
        %v1039 = vpop.f32.mrf.mxu0
        %v1040 = vadd.f32 0.0, %v1039
        %v1041 = vpop.f32.mrf.mxu0
        %v1042 = vadd.f32 0.0, %v1041
        %1043 = vmatprep.mubr.f32.mxu0 0.0
        %1044 = vmatmul.mubr.f32.gmra.mxu0 %v581
        %v1045 = vpop.f32.mrf.mxu0
        %v1046 = vadd.f32 0.0, %v1045
        %v1047 = vpop.f32.mrf.mxu0
        %v1048 = vadd.f32 0.0, %v1047
        %1049 = vmatprep.mubr.f32.mxu0 0.0
        %1050 = vmatmul.mubr.f32.gmra.mxu0 %v582
        %v1051 = vpop.f32.mrf.mxu0
        %v1052 = vadd.f32 0.0, %v1051
        %v1053 = vpop.f32.mrf.mxu0
        %v1054 = vadd.f32 0.0, %v1053
        %1055 = vmatprep.mubr.f32.mxu0 0.0
        %1056 = vmatmul.mubr.f32.gmra.mxu0 %v583
        %v1057 = vpop.f32.mrf.mxu0
        %v1058 = vadd.f32 0.0, %v1057
        %v1059 = vpop.f32.mrf.mxu0
        %v1060 = vadd.f32 0.0, %v1059
        %1061 = vmatprep.mubr.f32.mxu0 0.0
        %1062 = vmatmul.mubr.f32.gmra.mxu0 %v584
        %v1063 = vpop.f32.mrf.mxu0
        %v1064 = vadd.f32 0.0, %v1063
        %v1065 = vpop.f32.mrf.mxu0
        %v1066 = vadd.f32 0.0, %v1065
        %1067 = vmatprep.mubr.f32.mxu0 0.0
        %1068 = vmatmul.mubr.f32.gmra.mxu0 %v585
        %v1069 = vpop.f32.mrf.mxu0
        %v1070 = vadd.f32 0.0, %v1069
        %v1071 = vpop.f32.mrf.mxu0
        %v1072 = vadd.f32 0.0, %v1071
        %1073 = vmatprep.mubr.f32.mxu0 0.0
        %1074 = vmatmul.mubr.f32.gmra.mxu0 %v586
        %v1075 = vpop.f32.mrf.mxu0
        %v1076 = vadd.f32 0.0, %v1075
        %v1077 = vpop.f32.mrf.mxu0
        %v1078 = vadd.f32 0.0, %v1077
        %1079 = vmatprep.mubr.f32.mxu0 0.0
        %1080 = vmatmul.mubr.f32.gmra.mxu0 %v587
        %v1081 = vpop.f32.mrf.mxu0
        %v1082 = vadd.f32 0.0, %v1081
        %v1083 = vpop.f32.mrf.mxu0
        %v1084 = vadd.f32 0.0, %v1083
        %1085 = vmatprep.mubr.f32.mxu0 0.0
        %1086 = vmatmul.mubr.f32.gmra.mxu0 %v588
        %v1087 = vpop.f32.mrf.mxu0
        %v1088 = vadd.f32 0.0, %v1087
        %v1089 = vpop.f32.mrf.mxu0
        %v1090 = vadd.f32 0.0, %v1089
        %1091 = vmatprep.mubr.f32.mxu0 0.0
        %1092 = vmatmul.mubr.f32.gmra.mxu0 %v589
        %v1093 = vpop.f32.mrf.mxu0
        %v1094 = vadd.f32 0.0, %v1093
        %v1095 = vpop.f32.mrf.mxu0
        %v1096 = vadd.f32 0.0, %v1095
        %1097 = vmatprep.mubr.f32.mxu0 0.0
        %1098 = vmatmul.mubr.f32.gmra.mxu0 %v590
        %v1099 = vpop.f32.mrf.mxu0
        %v1100 = vadd.f32 0.0, %v1099
        %v1101 = vpop.f32.mrf.mxu0
        %v1102 = vadd.f32 0.0, %v1101
        %1103 = vmatprep.mubr.f32.mxu0 0.0
        %1104 = vmatmul.mubr.f32.gmra.mxu0 %v591
        %v1105 = vpop.f32.mrf.mxu0
        %v1106 = vadd.f32 0.0, %v1105
        %v1107 = vpop.f32.mrf.mxu0
        %v1108 = vadd.f32 0.0, %v1107
        %1109 = vmatprep.mubr.f32.mxu0 0.0
        %1110 = vmatmul.mubr.f32.gmra.mxu0 %v592
        %v1111 = vpop.f32.mrf.mxu0
        %v1112 = vadd.f32 0.0, %v1111
        %v1113 = vpop.f32.mrf.mxu0
        %v1114 = vadd.f32 0.0, %v1113
        %1115 = vmatprep.mubr.f32.mxu0 0.0
        %1116 = vmatmul.mubr.f32.gmra.mxu0 %v593
        %v1117 = vpop.f32.mrf.mxu0
        %v1118 = vadd.f32 0.0, %v1117
        %v1119 = vpop.f32.mrf.mxu0
        %v1120 = vadd.f32 0.0, %v1119
        %1121 = vmatprep.mubr.f32.mxu0 0.0
        %1122 = vmatmul.mubr.f32.gmra.mxu0 %v594
        %v1123 = vpop.f32.mrf.mxu0
        %v1124 = vadd.f32 0.0, %v1123
        %v1125 = vpop.f32.mrf.mxu0
        %v1126 = vadd.f32 0.0, %v1125
        %1127 = vmatprep.mubr.f32.mxu0 0.0
        %1128 = vmatmul.mubr.f32.gmra.mxu0 %v595
        %v1129 = vpop.f32.mrf.mxu0
        %v1130 = vadd.f32 0.0, %v1129
        %v1131 = vpop.f32.mrf.mxu0
        %v1132 = vadd.f32 0.0, %v1131
        %1133 = vmatprep.mubr.f32.mxu0 0.0
        %1134 = vmatmul.mubr.f32.gmra.mxu0 %v596
        %v1135 = vpop.f32.mrf.mxu0
        %v1136 = vadd.f32 0.0, %v1135
        %v1137 = vpop.f32.mrf.mxu0
        %v1138 = vadd.f32 0.0, %v1137
        %1139 = vmatprep.mubr.f32.mxu0 0.0
        %1140 = vmatmul.mubr.f32.gmra.mxu0 %v597
        %v1141 = vpop.f32.mrf.mxu0
        %v1142 = vadd.f32 0.0, %v1141
        %v1143 = vpop.f32.mrf.mxu0
        %v1144 = vadd.f32 0.0, %v1143
        %1145 = vmatprep.mubr.f32.mxu0 0.0
        %1146 = vmatmul.mubr.f32.gmra.mxu0 %v598
        %v1147 = vpop.f32.mrf.mxu0
        %v1148 = vadd.f32 0.0, %v1147
        %v1149 = vpop.f32.mrf.mxu0
        %v1150 = vadd.f32 0.0, %v1149
        %1151 = vmatprep.mubr.f32.mxu0 0.0
        %1152 = vmatmul.mubr.f32.gmra.mxu0 %v599
        %v1153 = vpop.f32.mrf.mxu0
        %v1154 = vadd.f32 0.0, %v1153
        %v1155 = vpop.f32.mrf.mxu0
        %v1156 = vadd.f32 0.0, %v1155
        %1157 = vmatprep.mubr.f32.mxu0 0.0
        %1158 = vmatmul.mubr.f32.gmra.mxu0 %v600
        %v1159 = vpop.f32.mrf.mxu0
        %v1160 = vadd.f32 0.0, %v1159
        %v1161 = vpop.f32.mrf.mxu0
        %v1162 = vadd.f32 0.0, %v1161
        %1163 = vmatprep.mubr.f32.mxu0 0.0
        %1164 = vmatmul.mubr.f32.gmra.mxu0 %v601
        %v1165 = vpop.f32.mrf.mxu0
        %v1166 = vadd.f32 0.0, %v1165
        %v1167 = vpop.f32.mrf.mxu0
        %v1168 = vadd.f32 0.0, %v1167
        %1169 = vmatprep.mubr.f32.mxu0 0.0
        %1170 = vmatmul.mubr.f32.gmra.mxu0 %v602
        %v1171 = vpop.f32.mrf.mxu0
        %v1172 = vadd.f32 0.0, %v1171
        %v1173 = vpop.f32.mrf.mxu0
        %v1174 = vadd.f32 0.0, %v1173
        %1175 = vmatprep.mubr.f32.mxu0 0.0
        %1176 = vmatmul.mubr.f32.gmra.mxu0 %v603
        %v1177 = vpop.f32.mrf.mxu0
        %v1178 = vadd.f32 0.0, %v1177
        %v1179 = vpop.f32.mrf.mxu0
        %v1180 = vadd.f32 0.0, %v1179
        %1181 = vdwg.mxu0
        %v1182 = vadd.f32 %v444, %v735
        %v1183 = vadd.f32 %v445, %v737
        %v1184 = vadd.f32 %v446, %v992
        %v1185 = vadd.f32 %v447, %v994
        %v1186 = vadd.f32 %v448, %v741
        %v1187 = vadd.f32 %v449, %v743
        %v1188 = vadd.f32 %v450, %v998
        %v1189 = vadd.f32 %v451, %v1000
        %v1190 = vadd.f32 %v452, %v747
        %v1191 = vadd.f32 %v453, %v749
        %v1192 = vadd.f32 %v454, %v1004
        %v1193 = vadd.f32 %v455, %v1006
        %v1194 = vadd.f32 %v456, %v753
        %v1195 = vadd.f32 %v457, %v755
        %v1196 = vadd.f32 %v458, %v1010
        %v1197 = vadd.f32 %v459, %v1012
        %v1198 = vadd.f32 %v460, %v759
        %v1199 = vadd.f32 %v461, %v761
        %v1200 = vadd.f32 %v462, %v1016
        %v1201 = vadd.f32 %v463, %v1018
        %v1202 = vadd.f32 %v464, %v765
        %v1203 = vadd.f32 %v465, %v767
        %v1204 = vadd.f32 %v466, %v1022
        %v1205 = vadd.f32 %v467, %v1024
        %v1206 = vadd.f32 %v468, %v771
        %v1207 = vadd.f32 %v469, %v773
        %v1208 = vadd.f32 %v470, %v1028
        %v1209 = vadd.f32 %v471, %v1030
        %v1210 = vadd.f32 %v472, %v777
        %v1211 = vadd.f32 %v473, %v779
        %v1212 = vadd.f32 %v474, %v1034
        %v1213 = vadd.f32 %v475, %v1036
        %v1214 = vadd.f32 %v476, %v783
        %v1215 = vadd.f32 %v477, %v785
        %v1216 = vadd.f32 %v478, %v1040
        %v1217 = vadd.f32 %v479, %v1042
        %v1218 = vadd.f32 %v480, %v789
        %v1219 = vadd.f32 %v481, %v791
        %v1220 = vadd.f32 %v482, %v1046
        %v1221 = vadd.f32 %v483, %v1048
        %v1222 = vadd.f32 %v484, %v795
        %v1223 = vadd.f32 %v485, %v797
        %v1224 = vadd.f32 %v486, %v1052
        %v1225 = vadd.f32 %v487, %v1054
        %v1226 = vadd.f32 %v488, %v801
        %v1227 = vadd.f32 %v489, %v803
        %v1228 = vadd.f32 %v490, %v1058
        %v1229 = vadd.f32 %v491, %v1060
        %v1230 = vadd.f32 %v492, %v807
        %v1231 = vadd.f32 %v493, %v809
        %v1232 = vadd.f32 %v494, %v1064
        %v1233 = vadd.f32 %v495, %v1066
        %v1234 = vadd.f32 %v496, %v813
        %v1235 = vadd.f32 %v497, %v815
        %v1236 = vadd.f32 %v498, %v1070
        %v1237 = vadd.f32 %v499, %v1072
        %v1238 = vadd.f32 %v500, %v819
        %v1239 = vadd.f32 %v501, %v821
        %v1240 = vadd.f32 %v502, %v1076
        %v1241 = vadd.f32 %v503, %v1078
        %v1242 = vadd.f32 %v504, %v825
        %v1243 = vadd.f32 %v505, %v827
        %v1244 = vadd.f32 %v506, %v1082
        %v1245 = vadd.f32 %v507, %v1084
        %v1246 = vadd.f32 %v508, %v831
        %v1247 = vadd.f32 %v509, %v833
        %v1248 = vadd.f32 %v510, %v1088
        %v1249 = vadd.f32 %v511, %v1090
        %v1250 = vadd.f32 %v512, %v837
        %v1251 = vadd.f32 %v513, %v839
        %v1252 = vadd.f32 %v514, %v1094
        %v1253 = vadd.f32 %v515, %v1096
        %v1254 = vadd.f32 %v516, %v843
        %v1255 = vadd.f32 %v517, %v845
        %v1256 = vadd.f32 %v518, %v1100
        %v1257 = vadd.f32 %v519, %v1102
        %v1258 = vadd.f32 %v520, %v849
        %v1259 = vadd.f32 %v521, %v851
        %v1260 = vadd.f32 %v522, %v1106
        %v1261 = vadd.f32 %v523, %v1108
        %v1262 = vadd.f32 %v524, %v855
        %v1263 = vadd.f32 %v525, %v857
        %v1264 = vadd.f32 %v526, %v1112
        %v1265 = vadd.f32 %v527, %v1114
        %v1266 = vadd.f32 %v528, %v861
        %v1267 = vadd.f32 %v529, %v863
        %v1268 = vadd.f32 %v530, %v1118
        %v1269 = vadd.f32 %v531, %v1120
        %v1270 = vadd.f32 %v532, %v867
        %v1271 = vadd.f32 %v533, %v869
        %v1272 = vadd.f32 %v534, %v1124
        %v1273 = vadd.f32 %v535, %v1126
        %v1274 = vadd.f32 %v536, %v873
        %v1275 = vadd.f32 %v537, %v875
        %v1276 = vadd.f32 %v538, %v1130
        %v1277 = vadd.f32 %v539, %v1132
        %v1278 = vadd.f32 %v540, %v879
        %v1279 = vadd.f32 %v541, %v881
        %v1280 = vadd.f32 %v542, %v1136
        %v1281 = vadd.f32 %v543, %v1138
        %v1282 = vadd.f32 %v544, %v885
        %v1283 = vadd.f32 %v545, %v887
        %v1284 = vadd.f32 %v546, %v1142
        %v1285 = vadd.f32 %v547, %v1144
        %v1286 = vadd.f32 %v548, %v891
        %v1287 = vadd.f32 %v549, %v893
        %v1288 = vadd.f32 %v550, %v1148
        %v1289 = vadd.f32 %v551, %v1150
        %v1290 = vadd.f32 %v552, %v897
        %v1291 = vadd.f32 %v553, %v899
        %v1292 = vadd.f32 %v554, %v1154
        %v1293 = vadd.f32 %v555, %v1156
        %v1294 = vadd.f32 %v556, %v903
        %v1295 = vadd.f32 %v557, %v905
        %v1296 = vadd.f32 %v558, %v1160
        %v1297 = vadd.f32 %v559, %v1162
        %v1298 = vadd.f32 %v560, %v909
        %v1299 = vadd.f32 %v561, %v911
        %v1300 = vadd.f32 %v562, %v1166
        %v1301 = vadd.f32 %v563, %v1168
        %v1302 = vadd.f32 %v564, %v915
        %v1303 = vadd.f32 %v565, %v917
        %v1304 = vadd.f32 %v566, %v1172
        %v1305 = vadd.f32 %v567, %v1174
        %v1306 = vadd.f32 %v568, %v921
        %v1307 = vadd.f32 %v569, %v923
        %v1308 = vadd.f32 %v570, %v1178
        %v1309 = vadd.f32 %v571, %v1180
        %1310 = vst [vmem:[#allocation2] sm:$0xff] %v1182
        %1311 = vst [vmem:[#allocation2 + $0x8] sm:$0xff] %v1183
        %1312 = vst [vmem:[#allocation2 + $0x10] sm:$0xff] %v1184
        %1313 = vst [vmem:[#allocation2 + $0x18] sm:$0xff] %v1185
        %1314 = vst [vmem:[#allocation2 + $0x20] sm:$0xff] %v1186
        %1315 = vst [vmem:[#allocation2 + $0x28] sm:$0xff] %v1187
        %1316 = vst [vmem:[#allocation2 + $0x30] sm:$0xff] %v1188
        %1317 = vst [vmem:[#allocation2 + $0x38] sm:$0xff] %v1189
        %1318 = vst [vmem:[#allocation2 + $0x40] sm:$0xff] %v1190
        %1319 = vst [vmem:[#allocation2 + $0x48] sm:$0xff] %v1191
        %1320 = vst [vmem:[#allocation2 + $0x50] sm:$0xff] %v1192
        %1321 = vst [vmem:[#allocation2 + $0x58] sm:$0xff] %v1193
        %1322 = vst [vmem:[#allocation2 + $0x60] sm:$0xff] %v1194
        %1323 = vst [vmem:[#allocation2 + $0x68] sm:$0xff] %v1195
        %1324 = vst [vmem:[#allocation2 + $0x70] sm:$0xff] %v1196
        %1325 = vst [vmem:[#allocation2 + $0x78] sm:$0xff] %v1197
        %1326 = vst [vmem:[#allocation2 + $0x80] sm:$0xff] %v1198
        %1327 = vst [vmem:[#allocation2 + $0x88] sm:$0xff] %v1199
        %1328 = vst [vmem:[#allocation2 + $0x90] sm:$0xff] %v1200
        %1329 = vst [vmem:[#allocation2 + $0x98] sm:$0xff] %v1201
        %1330 = vst [vmem:[#allocation2 + $0xa0] sm:$0xff] %v1202
        %1331 = vst [vmem:[#allocation2 + $0xa8] sm:$0xff] %v1203
        %1332 = vst [vmem:[#allocation2 + $0xb0] sm:$0xff] %v1204
        %1333 = vst [vmem:[#allocation2 + $0xb8] sm:$0xff] %v1205
        %1334 = vst [vmem:[#allocation2 + $0xc0] sm:$0xff] %v1206
        %1335 = vst [vmem:[#allocation2 + $0xc8] sm:$0xff] %v1207
        %1336 = vst [vmem:[#allocation2 + $0xd0] sm:$0xff] %v1208
        %1337 = vst [vmem:[#allocation2 + $0xd8] sm:$0xff] %v1209
        %1338 = vst [vmem:[#allocation2 + $0xe0] sm:$0xff] %v1210
        %1339 = vst [vmem:[#allocation2 + $0xe8] sm:$0xff] %v1211
        %1340 = vst [vmem:[#allocation2 + $0xf0] sm:$0xff] %v1212
        %1341 = vst [vmem:[#allocation2 + $0xf8] sm:$0xff] %v1213
        %1342 = vst [vmem:[#allocation2 + $0x100] sm:$0xff] %v1214
        %1343 = vst [vmem:[#allocation2 + $0x108] sm:$0xff] %v1215
        %1344 = vst [vmem:[#allocation2 + $0x110] sm:$0xff] %v1216
        %1345 = vst [vmem:[#allocation2 + $0x118] sm:$0xff] %v1217
        %1346 = vst [vmem:[#allocation2 + $0x120] sm:$0xff] %v1218
        %1347 = vst [vmem:[#allocation2 + $0x128] sm:$0xff] %v1219
        %1348 = vst [vmem:[#allocation2 + $0x130] sm:$0xff] %v1220
        %1349 = vst [vmem:[#allocation2 + $0x138] sm:$0xff] %v1221
        %1350 = vst [vmem:[#allocation2 + $0x140] sm:$0xff] %v1222
        %1351 = vst [vmem:[#allocation2 + $0x148] sm:$0xff] %v1223
        %1352 = vst [vmem:[#allocation2 + $0x150] sm:$0xff] %v1224
        %1353 = vst [vmem:[#allocation2 + $0x158] sm:$0xff] %v1225
        %1354 = vst [vmem:[#allocation2 + $0x160] sm:$0xff] %v1226
        %1355 = vst [vmem:[#allocation2 + $0x168] sm:$0xff] %v1227
        %1356 = vst [vmem:[#allocation2 + $0x170] sm:$0xff] %v1228
        %1357 = vst [vmem:[#allocation2 + $0x178] sm:$0xff] %v1229
        %1358 = vst [vmem:[#allocation2 + $0x180] sm:$0xff] %v1230
        %1359 = vst [vmem:[#allocation2 + $0x188] sm:$0xff] %v1231
        %1360 = vst [vmem:[#allocation2 + $0x190] sm:$0xff] %v1232
        %1361 = vst [vmem:[#allocation2 + $0x198] sm:$0xff] %v1233
        %1362 = vst [vmem:[#allocation2 + $0x1a0] sm:$0xff] %v1234
        %1363 = vst [vmem:[#allocation2 + $0x1a8] sm:$0xff] %v1235
        %1364 = vst [vmem:[#allocation2 + $0x1b0] sm:$0xff] %v1236
        %1365 = vst [vmem:[#allocation2 + $0x1b8] sm:$0xff] %v1237
        %1366 = vst [vmem:[#allocation2 + $0x1c0] sm:$0xff] %v1238
        %1367 = vst [vmem:[#allocation2 + $0x1c8] sm:$0xff] %v1239
        %1368 = vst [vmem:[#allocation2 + $0x1d0] sm:$0xff] %v1240
        %1369 = vst [vmem:[#allocation2 + $0x1d8] sm:$0xff] %v1241
        %1370 = vst [vmem:[#allocation2 + $0x1e0] sm:$0xff] %v1242
        %1371 = vst [vmem:[#allocation2 + $0x1e8] sm:$0xff] %v1243
        %1372 = vst [vmem:[#allocation2 + $0x1f0] sm:$0xff] %v1244
        %1373 = vst [vmem:[#allocation2 + $0x1f8] sm:$0xff] %v1245
        %1374 = vst [vmem:[#allocation2 + $0x200] sm:$0xff] %v1246
        %1375 = vst [vmem:[#allocation2 + $0x208] sm:$0xff] %v1247
        %1376 = vst [vmem:[#allocation2 + $0x210] sm:$0xff] %v1248
        %1377 = vst [vmem:[#allocation2 + $0x218] sm:$0xff] %v1249
        %1378 = vst [vmem:[#allocation2 + $0x220] sm:$0xff] %v1250
        %1379 = vst [vmem:[#allocation2 + $0x228] sm:$0xff] %v1251
        %1380 = vst [vmem:[#allocation2 + $0x230] sm:$0xff] %v1252
        %1381 = vst [vmem:[#allocation2 + $0x238] sm:$0xff] %v1253
        %1382 = vst [vmem:[#allocation2 + $0x240] sm:$0xff] %v1254
        %1383 = vst [vmem:[#allocation2 + $0x248] sm:$0xff] %v1255
        %1384 = vst [vmem:[#allocation2 + $0x250] sm:$0xff] %v1256
        %1385 = vst [vmem:[#allocation2 + $0x258] sm:$0xff] %v1257
        %1386 = vst [vmem:[#allocation2 + $0x260] sm:$0xff] %v1258
        %1387 = vst [vmem:[#allocation2 + $0x268] sm:$0xff] %v1259
        %1388 = vst [vmem:[#allocation2 + $0x270] sm:$0xff] %v1260
        %1389 = vst [vmem:[#allocation2 + $0x278] sm:$0xff] %v1261
        %1390 = vst [vmem:[#allocation2 + $0x280] sm:$0xff] %v1262
        %1391 = vst [vmem:[#allocation2 + $0x288] sm:$0xff] %v1263
        %1392 = vst [vmem:[#allocation2 + $0x290] sm:$0xff] %v1264
        %1393 = vst [vmem:[#allocation2 + $0x298] sm:$0xff] %v1265
        %1394 = vst [vmem:[#allocation2 + $0x2a0] sm:$0xff] %v1266
        %1395 = vst [vmem:[#allocation2 + $0x2a8] sm:$0xff] %v1267
        %1396 = vst [vmem:[#allocation2 + $0x2b0] sm:$0xff] %v1268
        %1397 = vst [vmem:[#allocation2 + $0x2b8] sm:$0xff] %v1269
        %1398 = vst [vmem:[#allocation2 + $0x2c0] sm:$0xff] %v1270
        %1399 = vst [vmem:[#allocation2 + $0x2c8] sm:$0xff] %v1271
        %1400 = vst [vmem:[#allocation2 + $0x2d0] sm:$0xff] %v1272
        %1401 = vst [vmem:[#allocation2 + $0x2d8] sm:$0xff] %v1273
        %1402 = vst [vmem:[#allocation2 + $0x2e0] sm:$0xff] %v1274
        %1403 = vst [vmem:[#allocation2 + $0x2e8] sm:$0xff] %v1275
        %1404 = vst [vmem:[#allocation2 + $0x2f0] sm:$0xff] %v1276
        %1405 = vst [vmem:[#allocation2 + $0x2f8] sm:$0xff] %v1277
        %1406 = vst [vmem:[#allocation2 + $0x300] sm:$0xff] %v1278
        %1407 = vst [vmem:[#allocation2 + $0x308] sm:$0xff] %v1279
        %1408 = vst [vmem:[#allocation2 + $0x310] sm:$0xff] %v1280
        %1409 = vst [vmem:[#allocation2 + $0x318] sm:$0xff] %v1281
        %1410 = vst [vmem:[#allocation2 + $0x320] sm:$0xff] %v1282
        %1411 = vst [vmem:[#allocation2 + $0x328] sm:$0xff] %v1283
        %1412 = vst [vmem:[#allocation2 + $0x330] sm:$0xff] %v1284
        %1413 = vst [vmem:[#allocation2 + $0x338] sm:$0xff] %v1285
        %1414 = vst [vmem:[#allocation2 + $0x340] sm:$0xff] %v1286
        %1415 = vst [vmem:[#allocation2 + $0x348] sm:$0xff] %v1287
        %1416 = vst [vmem:[#allocation2 + $0x350] sm:$0xff] %v1288
        %1417 = vst [vmem:[#allocation2 + $0x358] sm:$0xff] %v1289
        %1418 = vst [vmem:[#allocation2 + $0x360] sm:$0xff] %v1290
        %1419 = vst [vmem:[#allocation2 + $0x368] sm:$0xff] %v1291
        %1420 = vst [vmem:[#allocation2 + $0x370] sm:$0xff] %v1292
        %1421 = vst [vmem:[#allocation2 + $0x378] sm:$0xff] %v1293
        %1422 = vst [vmem:[#allocation2 + $0x380] sm:$0xff] %v1294
        %1423 = vst [vmem:[#allocation2 + $0x388] sm:$0xff] %v1295
        %1424 = vst [vmem:[#allocation2 + $0x390] sm:$0xff] %v1296
        %1425 = vst [vmem:[#allocation2 + $0x398] sm:$0xff] %v1297
        %1426 = vst [vmem:[#allocation2 + $0x3a0] sm:$0xff] %v1298
        %1427 = vst [vmem:[#allocation2 + $0x3a8] sm:$0xff] %v1299
        %1428 = vst [vmem:[#allocation2 + $0x3b0] sm:$0xff] %v1300
        %1429 = vst [vmem:[#allocation2 + $0x3b8] sm:$0xff] %v1301
        %1430 = vst [vmem:[#allocation2 + $0x3c0] sm:$0xff] %v1302
        %1431 = vst [vmem:[#allocation2 + $0x3c8] sm:$0xff] %v1303
        %1432 = vst [vmem:[#allocation2 + $0x3d0] sm:$0xff] %v1304
        %1433 = vst [vmem:[#allocation2 + $0x3d8] sm:$0xff] %v1305
        %1434 = vst [vmem:[#allocation2 + $0x3e0] sm:$0xff] %v1306
        %1435 = vst [vmem:[#allocation2 + $0x3e8] sm:$0xff] %v1307
        %1436 = vst [vmem:[#allocation2 + $0x3f0] sm:$0xff] %v1308
        %1437 = vst [vmem:[#allocation2 + $0x3f8] sm:$0xff] %v1309
        // Predicated region
        $region61: #{tpu_custom_call.1} parent=39 // pred_check
          %p1438 = pneg %p312
        $region62: #{tpu_custom_call.1} parent=39 // pred_check_branch
          %1440 = sbr.rel (%p1438) target = $region64
        $region63: #{tpu_custom_call.1} parent=39 // pred_region
          %v1441 = vld [vmem:[#allocation2] sm:$0xff]
          %v1442 = vld [vmem:[#allocation2 + $0x8] sm:$0xff]
          %v1443 = vld [vmem:[#allocation2 + $0x10] sm:$0xff]
          %v1444 = vld [vmem:[#allocation2 + $0x18] sm:$0xff]
          %v1445 = vld [vmem:[#allocation2 + $0x20] sm:$0xff]
          %v1446 = vld [vmem:[#allocation2 + $0x28] sm:$0xff]
          %v1447 = vld [vmem:[#allocation2 + $0x30] sm:$0xff]
          %v1448 = vld [vmem:[#allocation2 + $0x38] sm:$0xff]
          %v1449 = vld [vmem:[#allocation2 + $0x40] sm:$0xff]
          %v1450 = vld [vmem:[#allocation2 + $0x48] sm:$0xff]
          %v1451 = vld [vmem:[#allocation2 + $0x50] sm:$0xff]
          %v1452 = vld [vmem:[#allocation2 + $0x58] sm:$0xff]
          %v1453 = vld [vmem:[#allocation2 + $0x60] sm:$0xff]
          %v1454 = vld [vmem:[#allocation2 + $0x68] sm:$0xff]
          %v1455 = vld [vmem:[#allocation2 + $0x70] sm:$0xff]
          %v1456 = vld [vmem:[#allocation2 + $0x78] sm:$0xff]
          %v1457 = vld [vmem:[#allocation2 + $0x80] sm:$0xff]
          %v1458 = vld [vmem:[#allocation2 + $0x88] sm:$0xff]
          %v1459 = vld [vmem:[#allocation2 + $0x90] sm:$0xff]
          %v1460 = vld [vmem:[#allocation2 + $0x98] sm:$0xff]
          %v1461 = vld [vmem:[#allocation2 + $0xa0] sm:$0xff]
          %v1462 = vld [vmem:[#allocation2 + $0xa8] sm:$0xff]
          %v1463 = vld [vmem:[#allocation2 + $0xb0] sm:$0xff]
          %v1464 = vld [vmem:[#allocation2 + $0xb8] sm:$0xff]
          %v1465 = vld [vmem:[#allocation2 + $0xc0] sm:$0xff]
          %v1466 = vld [vmem:[#allocation2 + $0xc8] sm:$0xff]
          %v1467 = vld [vmem:[#allocation2 + $0xd0] sm:$0xff]
          %v1468 = vld [vmem:[#allocation2 + $0xd8] sm:$0xff]
          %v1469 = vld [vmem:[#allocation2 + $0xe0] sm:$0xff]
          %v1470 = vld [vmem:[#allocation2 + $0xe8] sm:$0xff]
          %v1471 = vld [vmem:[#allocation2 + $0xf0] sm:$0xff]
          %v1472 = vld [vmem:[#allocation2 + $0xf8] sm:$0xff]
          %v1473 = vld [vmem:[#allocation2 + $0x100] sm:$0xff]
          %v1474 = vld [vmem:[#allocation2 + $0x108] sm:$0xff]
          %v1475 = vld [vmem:[#allocation2 + $0x110] sm:$0xff]
          %v1476 = vld [vmem:[#allocation2 + $0x118] sm:$0xff]
          %v1477 = vld [vmem:[#allocation2 + $0x120] sm:$0xff]
          %v1478 = vld [vmem:[#allocation2 + $0x128] sm:$0xff]
          %v1479 = vld [vmem:[#allocation2 + $0x130] sm:$0xff]
          %v1480 = vld [vmem:[#allocation2 + $0x138] sm:$0xff]
          %v1481 = vld [vmem:[#allocation2 + $0x140] sm:$0xff]
          %v1482 = vld [vmem:[#allocation2 + $0x148] sm:$0xff]
          %v1483 = vld [vmem:[#allocation2 + $0x150] sm:$0xff]
          %v1484 = vld [vmem:[#allocation2 + $0x158] sm:$0xff]
          %v1485 = vld [vmem:[#allocation2 + $0x160] sm:$0xff]
          %v1486 = vld [vmem:[#allocation2 + $0x168] sm:$0xff]
          %v1487 = vld [vmem:[#allocation2 + $0x170] sm:$0xff]
          %v1488 = vld [vmem:[#allocation2 + $0x178] sm:$0xff]
          %v1489 = vld [vmem:[#allocation2 + $0x180] sm:$0xff]
          %v1490 = vld [vmem:[#allocation2 + $0x188] sm:$0xff]
          %v1491 = vld [vmem:[#allocation2 + $0x190] sm:$0xff]
          %v1492 = vld [vmem:[#allocation2 + $0x198] sm:$0xff]
          %v1493 = vld [vmem:[#allocation2 + $0x1a0] sm:$0xff]
          %v1494 = vld [vmem:[#allocation2 + $0x1a8] sm:$0xff]
          %v1495 = vld [vmem:[#allocation2 + $0x1b0] sm:$0xff]
          %v1496 = vld [vmem:[#allocation2 + $0x1b8] sm:$0xff]
          %v1497 = vld [vmem:[#allocation2 + $0x1c0] sm:$0xff]
          %v1498 = vld [vmem:[#allocation2 + $0x1c8] sm:$0xff]
          %v1499 = vld [vmem:[#allocation2 + $0x1d0] sm:$0xff]
          %v1500 = vld [vmem:[#allocation2 + $0x1d8] sm:$0xff]
          %v1501 = vld [vmem:[#allocation2 + $0x1e0] sm:$0xff]
          %v1502 = vld [vmem:[#allocation2 + $0x1e8] sm:$0xff]
          %v1503 = vld [vmem:[#allocation2 + $0x1f0] sm:$0xff]
          %v1504 = vld [vmem:[#allocation2 + $0x1f8] sm:$0xff]
          %v1505 = vld [vmem:[#allocation2 + $0x200] sm:$0xff]
          %v1506 = vld [vmem:[#allocation2 + $0x208] sm:$0xff]
          %v1507 = vld [vmem:[#allocation2 + $0x210] sm:$0xff]
          %v1508 = vld [vmem:[#allocation2 + $0x218] sm:$0xff]
          %v1509 = vld [vmem:[#allocation2 + $0x220] sm:$0xff]
          %v1510 = vld [vmem:[#allocation2 + $0x228] sm:$0xff]
          %v1511 = vld [vmem:[#allocation2 + $0x230] sm:$0xff]
          %v1512 = vld [vmem:[#allocation2 + $0x238] sm:$0xff]
          %v1513 = vld [vmem:[#allocation2 + $0x240] sm:$0xff]
          %v1514 = vld [vmem:[#allocation2 + $0x248] sm:$0xff]
          %v1515 = vld [vmem:[#allocation2 + $0x250] sm:$0xff]
          %v1516 = vld [vmem:[#allocation2 + $0x258] sm:$0xff]
          %v1517 = vld [vmem:[#allocation2 + $0x260] sm:$0xff]
          %v1518 = vld [vmem:[#allocation2 + $0x268] sm:$0xff]
          %v1519 = vld [vmem:[#allocation2 + $0x270] sm:$0xff]
          %v1520 = vld [vmem:[#allocation2 + $0x278] sm:$0xff]
          %v1521 = vld [vmem:[#allocation2 + $0x280] sm:$0xff]
          %v1522 = vld [vmem:[#allocation2 + $0x288] sm:$0xff]
          %v1523 = vld [vmem:[#allocation2 + $0x290] sm:$0xff]
          %v1524 = vld [vmem:[#allocation2 + $0x298] sm:$0xff]
          %v1525 = vld [vmem:[#allocation2 + $0x2a0] sm:$0xff]
          %v1526 = vld [vmem:[#allocation2 + $0x2a8] sm:$0xff]
          %v1527 = vld [vmem:[#allocation2 + $0x2b0] sm:$0xff]
          %v1528 = vld [vmem:[#allocation2 + $0x2b8] sm:$0xff]
          %v1529 = vld [vmem:[#allocation2 + $0x2c0] sm:$0xff]
          %v1530 = vld [vmem:[#allocation2 + $0x2c8] sm:$0xff]
          %v1531 = vld [vmem:[#allocation2 + $0x2d0] sm:$0xff]
          %v1532 = vld [vmem:[#allocation2 + $0x2d8] sm:$0xff]
          %v1533 = vld [vmem:[#allocation2 + $0x2e0] sm:$0xff]
          %v1534 = vld [vmem:[#allocation2 + $0x2e8] sm:$0xff]
          %v1535 = vld [vmem:[#allocation2 + $0x2f0] sm:$0xff]
          %v1536 = vld [vmem:[#allocation2 + $0x2f8] sm:$0xff]
          %v1537 = vld [vmem:[#allocation2 + $0x300] sm:$0xff]
          %v1538 = vld [vmem:[#allocation2 + $0x308] sm:$0xff]
          %v1539 = vld [vmem:[#allocation2 + $0x310] sm:$0xff]
          %v1540 = vld [vmem:[#allocation2 + $0x318] sm:$0xff]
          %v1541 = vld [vmem:[#allocation2 + $0x320] sm:$0xff]
          %v1542 = vld [vmem:[#allocation2 + $0x328] sm:$0xff]
          %v1543 = vld [vmem:[#allocation2 + $0x330] sm:$0xff]
          %v1544 = vld [vmem:[#allocation2 + $0x338] sm:$0xff]
          %v1545 = vld [vmem:[#allocation2 + $0x340] sm:$0xff]
          %v1546 = vld [vmem:[#allocation2 + $0x348] sm:$0xff]
          %v1547 = vld [vmem:[#allocation2 + $0x350] sm:$0xff]
          %v1548 = vld [vmem:[#allocation2 + $0x358] sm:$0xff]
          %v1549 = vld [vmem:[#allocation2 + $0x360] sm:$0xff]
          %v1550 = vld [vmem:[#allocation2 + $0x368] sm:$0xff]
          %v1551 = vld [vmem:[#allocation2 + $0x370] sm:$0xff]
          %v1552 = vld [vmem:[#allocation2 + $0x378] sm:$0xff]
          %v1553 = vld [vmem:[#allocation2 + $0x380] sm:$0xff]
          %v1554 = vld [vmem:[#allocation2 + $0x388] sm:$0xff]
          %v1555 = vld [vmem:[#allocation2 + $0x390] sm:$0xff]
          %v1556 = vld [vmem:[#allocation2 + $0x398] sm:$0xff]
          %v1557 = vld [vmem:[#allocation2 + $0x3a0] sm:$0xff]
          %v1558 = vld [vmem:[#allocation2 + $0x3a8] sm:$0xff]
          %v1559 = vld [vmem:[#allocation2 + $0x3b0] sm:$0xff]
          %v1560 = vld [vmem:[#allocation2 + $0x3b8] sm:$0xff]
          %v1561 = vld [vmem:[#allocation2 + $0x3c0] sm:$0xff]
          %v1562 = vld [vmem:[#allocation2 + $0x3c8] sm:$0xff]
          %v1563 = vld [vmem:[#allocation2 + $0x3d0] sm:$0xff]
          %v1564 = vld [vmem:[#allocation2 + $0x3d8] sm:$0xff]
          %v1565 = vld [vmem:[#allocation2 + $0x3e0] sm:$0xff]
          %v1566 = vld [vmem:[#allocation2 + $0x3e8] sm:$0xff]
          %v1567 = vld [vmem:[#allocation2 + $0x3f0] sm:$0xff]
          %v1568 = vld [vmem:[#allocation2 + $0x3f8] sm:$0xff]
          %v1569 = vld [vmem:[#allocation8] sm:$0xf]
          %v1571 = vlaneseq
          %v1572 = vshrl.u32 %v1571, 7
          %v1573 = vsub.s32 0, %v1572
          %v1574 = vrot.slane %v1569, %v1573
          %v1575 = vlaneseq
          %v1576 = vshrl.u32 %v1575, 7
          %v1577 = vsub.s32 1, %v1576
          %v1578 = vrot.slane %v1569, %v1577
          %v1579 = vlaneseq
          %v1580 = vshrl.u32 %v1579, 7
          %v1581 = vsub.s32 2, %v1580
          %v1582 = vrot.slane %v1569, %v1581
          %v1583 = vlaneseq
          %v1584 = vshrl.u32 %v1583, 7
          %v1585 = vsub.s32 3, %v1584
          %v1586 = vrot.slane %v1569, %v1585
          %v1591 = vadd.f32 %v1441, %v1574
          %v1592 = vadd.f32 %v1442, %v1578
          %v1593 = vadd.f32 %v1443, %v1582
          %v1594 = vadd.f32 %v1444, %v1586
          %v1595 = vadd.f32 %v1445, %v1574
          %v1596 = vadd.f32 %v1446, %v1578
          %v1597 = vadd.f32 %v1447, %v1582
          %v1598 = vadd.f32 %v1448, %v1586
          %v1599 = vadd.f32 %v1449, %v1574
          %v1600 = vadd.f32 %v1450, %v1578
          %v1601 = vadd.f32 %v1451, %v1582
          %v1602 = vadd.f32 %v1452, %v1586
          %v1603 = vadd.f32 %v1453, %v1574
          %v1604 = vadd.f32 %v1454, %v1578
          %v1605 = vadd.f32 %v1455, %v1582
          %v1606 = vadd.f32 %v1456, %v1586
          %v1607 = vadd.f32 %v1457, %v1574
          %v1608 = vadd.f32 %v1458, %v1578
          %v1609 = vadd.f32 %v1459, %v1582
          %v1610 = vadd.f32 %v1460, %v1586
          %v1611 = vadd.f32 %v1461, %v1574
          %v1612 = vadd.f32 %v1462, %v1578
          %v1613 = vadd.f32 %v1463, %v1582
          %v1614 = vadd.f32 %v1464, %v1586
          %v1615 = vadd.f32 %v1465, %v1574
          %v1616 = vadd.f32 %v1466, %v1578
          %v1617 = vadd.f32 %v1467, %v1582
          %v1618 = vadd.f32 %v1468, %v1586
          %v1619 = vadd.f32 %v1469, %v1574
          %v1620 = vadd.f32 %v1470, %v1578
          %v1621 = vadd.f32 %v1471, %v1582
          %v1622 = vadd.f32 %v1472, %v1586
          %v1623 = vadd.f32 %v1473, %v1574
          %v1624 = vadd.f32 %v1474, %v1578
          %v1625 = vadd.f32 %v1475, %v1582
          %v1626 = vadd.f32 %v1476, %v1586
          %v1627 = vadd.f32 %v1477, %v1574
          %v1628 = vadd.f32 %v1478, %v1578
          %v1629 = vadd.f32 %v1479, %v1582
          %v1630 = vadd.f32 %v1480, %v1586
          %v1631 = vadd.f32 %v1481, %v1574
          %v1632 = vadd.f32 %v1482, %v1578
          %v1633 = vadd.f32 %v1483, %v1582
          %v1634 = vadd.f32 %v1484, %v1586
          %v1635 = vadd.f32 %v1485, %v1574
          %v1636 = vadd.f32 %v1486, %v1578
          %v1637 = vadd.f32 %v1487, %v1582
          %v1638 = vadd.f32 %v1488, %v1586
          %v1639 = vadd.f32 %v1489, %v1574
          %v1640 = vadd.f32 %v1490, %v1578
          %v1641 = vadd.f32 %v1491, %v1582
          %v1642 = vadd.f32 %v1492, %v1586
          %v1643 = vadd.f32 %v1493, %v1574
          %v1644 = vadd.f32 %v1494, %v1578
          %v1645 = vadd.f32 %v1495, %v1582
          %v1646 = vadd.f32 %v1496, %v1586
          %v1647 = vadd.f32 %v1497, %v1574
          %v1648 = vadd.f32 %v1498, %v1578
          %v1649 = vadd.f32 %v1499, %v1582
          %v1650 = vadd.f32 %v1500, %v1586
          %v1651 = vadd.f32 %v1501, %v1574
          %v1652 = vadd.f32 %v1502, %v1578
          %v1653 = vadd.f32 %v1503, %v1582
          %v1654 = vadd.f32 %v1504, %v1586
          %v1655 = vadd.f32 %v1505, %v1574
          %v1656 = vadd.f32 %v1506, %v1578
          %v1657 = vadd.f32 %v1507, %v1582
          %v1658 = vadd.f32 %v1508, %v1586
          %v1659 = vadd.f32 %v1509, %v1574
          %v1660 = vadd.f32 %v1510, %v1578
          %v1661 = vadd.f32 %v1511, %v1582
          %v1662 = vadd.f32 %v1512, %v1586
          %v1663 = vadd.f32 %v1513, %v1574
          %v1664 = vadd.f32 %v1514, %v1578
          %v1665 = vadd.f32 %v1515, %v1582
          %v1666 = vadd.f32 %v1516, %v1586
          %v1667 = vadd.f32 %v1517, %v1574
          %v1668 = vadd.f32 %v1518, %v1578
          %v1669 = vadd.f32 %v1519, %v1582
          %v1670 = vadd.f32 %v1520, %v1586
          %v1671 = vadd.f32 %v1521, %v1574
          %v1672 = vadd.f32 %v1522, %v1578
          %v1673 = vadd.f32 %v1523, %v1582
          %v1674 = vadd.f32 %v1524, %v1586
          %v1675 = vadd.f32 %v1525, %v1574
          %v1676 = vadd.f32 %v1526, %v1578
          %v1677 = vadd.f32 %v1527, %v1582
          %v1678 = vadd.f32 %v1528, %v1586
          %v1679 = vadd.f32 %v1529, %v1574
          %v1680 = vadd.f32 %v1530, %v1578
          %v1681 = vadd.f32 %v1531, %v1582
          %v1682 = vadd.f32 %v1532, %v1586
          %v1683 = vadd.f32 %v1533, %v1574
          %v1684 = vadd.f32 %v1534, %v1578
          %v1685 = vadd.f32 %v1535, %v1582
          %v1686 = vadd.f32 %v1536, %v1586
          %v1687 = vadd.f32 %v1537, %v1574
          %v1688 = vadd.f32 %v1538, %v1578
          %v1689 = vadd.f32 %v1539, %v1582
          %v1690 = vadd.f32 %v1540, %v1586
          %v1691 = vadd.f32 %v1541, %v1574
          %v1692 = vadd.f32 %v1542, %v1578
          %v1693 = vadd.f32 %v1543, %v1582
          %v1694 = vadd.f32 %v1544, %v1586
          %v1695 = vadd.f32 %v1545, %v1574
          %v1696 = vadd.f32 %v1546, %v1578
          %v1697 = vadd.f32 %v1547, %v1582
          %v1698 = vadd.f32 %v1548, %v1586
          %v1699 = vadd.f32 %v1549, %v1574
          %v1700 = vadd.f32 %v1550, %v1578
          %v1701 = vadd.f32 %v1551, %v1582
          %v1702 = vadd.f32 %v1552, %v1586
          %v1703 = vadd.f32 %v1553, %v1574
          %v1704 = vadd.f32 %v1554, %v1578
          %v1705 = vadd.f32 %v1555, %v1582
          %v1706 = vadd.f32 %v1556, %v1586
          %v1707 = vadd.f32 %v1557, %v1574
          %v1708 = vadd.f32 %v1558, %v1578
          %v1709 = vadd.f32 %v1559, %v1582
          %v1710 = vadd.f32 %v1560, %v1586
          %v1711 = vadd.f32 %v1561, %v1574
          %v1712 = vadd.f32 %v1562, %v1578
          %v1713 = vadd.f32 %v1563, %v1582
          %v1714 = vadd.f32 %v1564, %v1586
          %v1715 = vadd.f32 %v1565, %v1574
          %v1716 = vadd.f32 %v1566, %v1578
          %v1717 = vadd.f32 %v1567, %v1582
          %v1718 = vadd.f32 %v1568, %v1586
          %v1719 = vmax.f32 %v1591, 0.0
          %v1720 = vmax.f32 %v1592, 0.0
          %v1721 = vmax.f32 %v1593, 0.0
          %v1722 = vmax.f32 %v1594, 0.0
          %v1723 = vmax.f32 %v1595, 0.0
          %v1724 = vmax.f32 %v1596, 0.0
          %v1725 = vmax.f32 %v1597, 0.0
          %v1726 = vmax.f32 %v1598, 0.0
          %v1727 = vmax.f32 %v1599, 0.0
          %v1728 = vmax.f32 %v1600, 0.0
          %v1729 = vmax.f32 %v1601, 0.0
          %v1730 = vmax.f32 %v1602, 0.0
          %v1731 = vmax.f32 %v1603, 0.0
          %v1732 = vmax.f32 %v1604, 0.0
          %v1733 = vmax.f32 %v1605, 0.0
          %v1734 = vmax.f32 %v1606, 0.0
          %v1735 = vmax.f32 %v1607, 0.0
          %v1736 = vmax.f32 %v1608, 0.0
          %v1737 = vmax.f32 %v1609, 0.0
          %v1738 = vmax.f32 %v1610, 0.0
          %v1739 = vmax.f32 %v1611, 0.0
          %v1740 = vmax.f32 %v1612, 0.0
          %v1741 = vmax.f32 %v1613, 0.0
          %v1742 = vmax.f32 %v1614, 0.0
          %v1743 = vmax.f32 %v1615, 0.0
          %v1744 = vmax.f32 %v1616, 0.0
          %v1745 = vmax.f32 %v1617, 0.0
          %v1746 = vmax.f32 %v1618, 0.0
          %v1747 = vmax.f32 %v1619, 0.0
          %v1748 = vmax.f32 %v1620, 0.0
          %v1749 = vmax.f32 %v1621, 0.0
          %v1750 = vmax.f32 %v1622, 0.0
          %v1751 = vmax.f32 %v1623, 0.0
          %v1752 = vmax.f32 %v1624, 0.0
          %v1753 = vmax.f32 %v1625, 0.0
          %v1754 = vmax.f32 %v1626, 0.0
          %v1755 = vmax.f32 %v1627, 0.0
          %v1756 = vmax.f32 %v1628, 0.0
          %v1757 = vmax.f32 %v1629, 0.0
          %v1758 = vmax.f32 %v1630, 0.0
          %v1759 = vmax.f32 %v1631, 0.0
          %v1760 = vmax.f32 %v1632, 0.0
          %v1761 = vmax.f32 %v1633, 0.0
          %v1762 = vmax.f32 %v1634, 0.0
          %v1763 = vmax.f32 %v1635, 0.0
          %v1764 = vmax.f32 %v1636, 0.0
          %v1765 = vmax.f32 %v1637, 0.0
          %v1766 = vmax.f32 %v1638, 0.0
          %v1767 = vmax.f32 %v1639, 0.0
          %v1768 = vmax.f32 %v1640, 0.0
          %v1769 = vmax.f32 %v1641, 0.0
          %v1770 = vmax.f32 %v1642, 0.0
          %v1771 = vmax.f32 %v1643, 0.0
          %v1772 = vmax.f32 %v1644, 0.0
          %v1773 = vmax.f32 %v1645, 0.0
          %v1774 = vmax.f32 %v1646, 0.0
          %v1775 = vmax.f32 %v1647, 0.0
          %v1776 = vmax.f32 %v1648, 0.0
          %v1777 = vmax.f32 %v1649, 0.0
          %v1778 = vmax.f32 %v1650, 0.0
          %v1779 = vmax.f32 %v1651, 0.0
          %v1780 = vmax.f32 %v1652, 0.0
          %v1781 = vmax.f32 %v1653, 0.0
          %v1782 = vmax.f32 %v1654, 0.0
          %v1783 = vmax.f32 %v1655, 0.0
          %v1784 = vmax.f32 %v1656, 0.0
          %v1785 = vmax.f32 %v1657, 0.0
          %v1786 = vmax.f32 %v1658, 0.0
          %v1787 = vmax.f32 %v1659, 0.0
          %v1788 = vmax.f32 %v1660, 0.0
          %v1789 = vmax.f32 %v1661, 0.0
          %v1790 = vmax.f32 %v1662, 0.0
          %v1791 = vmax.f32 %v1663, 0.0
          %v1792 = vmax.f32 %v1664, 0.0
          %v1793 = vmax.f32 %v1665, 0.0
          %v1794 = vmax.f32 %v1666, 0.0
          %v1795 = vmax.f32 %v1667, 0.0
          %v1796 = vmax.f32 %v1668, 0.0
          %v1797 = vmax.f32 %v1669, 0.0
          %v1798 = vmax.f32 %v1670, 0.0
          %v1799 = vmax.f32 %v1671, 0.0
          %v1800 = vmax.f32 %v1672, 0.0
          %v1801 = vmax.f32 %v1673, 0.0
          %v1802 = vmax.f32 %v1674, 0.0
          %v1803 = vmax.f32 %v1675, 0.0
          %v1804 = vmax.f32 %v1676, 0.0
          %v1805 = vmax.f32 %v1677, 0.0
          %v1806 = vmax.f32 %v1678, 0.0
          %v1807 = vmax.f32 %v1679, 0.0
          %v1808 = vmax.f32 %v1680, 0.0
          %v1809 = vmax.f32 %v1681, 0.0
          %v1810 = vmax.f32 %v1682, 0.0
          %v1811 = vmax.f32 %v1683, 0.0
          %v1812 = vmax.f32 %v1684, 0.0
          %v1813 = vmax.f32 %v1685, 0.0
          %v1814 = vmax.f32 %v1686, 0.0
          %v1815 = vmax.f32 %v1687, 0.0
          %v1816 = vmax.f32 %v1688, 0.0
          %v1817 = vmax.f32 %v1689, 0.0
          %v1818 = vmax.f32 %v1690, 0.0
          %v1819 = vmax.f32 %v1691, 0.0
          %v1820 = vmax.f32 %v1692, 0.0
          %v1821 = vmax.f32 %v1693, 0.0
          %v1822 = vmax.f32 %v1694, 0.0
          %v1823 = vmax.f32 %v1695, 0.0
          %v1824 = vmax.f32 %v1696, 0.0
          %v1825 = vmax.f32 %v1697, 0.0
          %v1826 = vmax.f32 %v1698, 0.0
          %v1827 = vmax.f32 %v1699, 0.0
          %v1828 = vmax.f32 %v1700, 0.0
          %v1829 = vmax.f32 %v1701, 0.0
          %v1830 = vmax.f32 %v1702, 0.0
          %v1831 = vmax.f32 %v1703, 0.0
          %v1832 = vmax.f32 %v1704, 0.0
          %v1833 = vmax.f32 %v1705, 0.0
          %v1834 = vmax.f32 %v1706, 0.0
          %v1835 = vmax.f32 %v1707, 0.0
          %v1836 = vmax.f32 %v1708, 0.0
          %v1837 = vmax.f32 %v1709, 0.0
          %v1838 = vmax.f32 %v1710, 0.0
          %v1839 = vmax.f32 %v1711, 0.0
          %v1840 = vmax.f32 %v1712, 0.0
          %v1841 = vmax.f32 %v1713, 0.0
          %v1842 = vmax.f32 %v1714, 0.0
          %v1843 = vmax.f32 %v1715, 0.0
          %v1844 = vmax.f32 %v1716, 0.0
          %v1845 = vmax.f32 %v1717, 0.0
          %v1846 = vmax.f32 %v1718, 0.0
          %v1847 = vld [vmem:[#allocation9] sm:$0xff]
          %v1848 = vld [vmem:[#allocation9 + $0x8] sm:$0xff]
          %v1849 = vld [vmem:[#allocation9 + $0x10] sm:$0xff]
          %v1850 = vld [vmem:[#allocation9 + $0x18] sm:$0xff]
          %v1851 = vld [vmem:[#allocation9 + $0x20] sm:$0xff]
          %v1852 = vld [vmem:[#allocation9 + $0x28] sm:$0xff]
          %v1853 = vld [vmem:[#allocation9 + $0x30] sm:$0xff]
          %v1854 = vld [vmem:[#allocation9 + $0x38] sm:$0xff]
          %v1855 = vld [vmem:[#allocation9 + $0x40] sm:$0xff]
          %v1856 = vld [vmem:[#allocation9 + $0x48] sm:$0xff]
          %v1857 = vld [vmem:[#allocation9 + $0x50] sm:$0xff]
          %v1858 = vld [vmem:[#allocation9 + $0x58] sm:$0xff]
          %v1859 = vld [vmem:[#allocation9 + $0x60] sm:$0xff]
          %v1860 = vld [vmem:[#allocation9 + $0x68] sm:$0xff]
          %v1861 = vld [vmem:[#allocation9 + $0x70] sm:$0xff]
          %v1862 = vld [vmem:[#allocation9 + $0x78] sm:$0xff]
          %v1863 = vld [vmem:[#allocation9 + $0x80] sm:$0xff]
          %v1864 = vld [vmem:[#allocation9 + $0x88] sm:$0xff]
          %v1865 = vld [vmem:[#allocation9 + $0x90] sm:$0xff]
          %v1866 = vld [vmem:[#allocation9 + $0x98] sm:$0xff]
          %v1867 = vld [vmem:[#allocation9 + $0xa0] sm:$0xff]
          %v1868 = vld [vmem:[#allocation9 + $0xa8] sm:$0xff]
          %v1869 = vld [vmem:[#allocation9 + $0xb0] sm:$0xff]
          %v1870 = vld [vmem:[#allocation9 + $0xb8] sm:$0xff]
          %v1871 = vld [vmem:[#allocation9 + $0xc0] sm:$0xff]
          %v1872 = vld [vmem:[#allocation9 + $0xc8] sm:$0xff]
          %v1873 = vld [vmem:[#allocation9 + $0xd0] sm:$0xff]
          %v1874 = vld [vmem:[#allocation9 + $0xd8] sm:$0xff]
          %v1875 = vld [vmem:[#allocation9 + $0xe0] sm:$0xff]
          %v1876 = vld [vmem:[#allocation9 + $0xe8] sm:$0xff]
          %v1877 = vld [vmem:[#allocation9 + $0xf0] sm:$0xff]
          %v1878 = vld [vmem:[#allocation9 + $0xf8] sm:$0xff]
          %v1879 = vld [vmem:[#allocation9 + $0x100] sm:$0xff]
          %v1880 = vld [vmem:[#allocation9 + $0x108] sm:$0xff]
          %v1881 = vld [vmem:[#allocation9 + $0x110] sm:$0xff]
          %v1882 = vld [vmem:[#allocation9 + $0x118] sm:$0xff]
          %v1883 = vld [vmem:[#allocation9 + $0x120] sm:$0xff]
          %v1884 = vld [vmem:[#allocation9 + $0x128] sm:$0xff]
          %v1885 = vld [vmem:[#allocation9 + $0x130] sm:$0xff]
          %v1886 = vld [vmem:[#allocation9 + $0x138] sm:$0xff]
          %v1887 = vld [vmem:[#allocation9 + $0x140] sm:$0xff]
          %v1888 = vld [vmem:[#allocation9 + $0x148] sm:$0xff]
          %v1889 = vld [vmem:[#allocation9 + $0x150] sm:$0xff]
          %v1890 = vld [vmem:[#allocation9 + $0x158] sm:$0xff]
          %v1891 = vld [vmem:[#allocation9 + $0x160] sm:$0xff]
          %v1892 = vld [vmem:[#allocation9 + $0x168] sm:$0xff]
          %v1893 = vld [vmem:[#allocation9 + $0x170] sm:$0xff]
          %v1894 = vld [vmem:[#allocation9 + $0x178] sm:$0xff]
          %v1895 = vld [vmem:[#allocation9 + $0x180] sm:$0xff]
          %v1896 = vld [vmem:[#allocation9 + $0x188] sm:$0xff]
          %v1897 = vld [vmem:[#allocation9 + $0x190] sm:$0xff]
          %v1898 = vld [vmem:[#allocation9 + $0x198] sm:$0xff]
          %v1899 = vld [vmem:[#allocation9 + $0x1a0] sm:$0xff]
          %v1900 = vld [vmem:[#allocation9 + $0x1a8] sm:$0xff]
          %v1901 = vld [vmem:[#allocation9 + $0x1b0] sm:$0xff]
          %v1902 = vld [vmem:[#allocation9 + $0x1b8] sm:$0xff]
          %v1903 = vld [vmem:[#allocation9 + $0x1c0] sm:$0xff]
          %v1904 = vld [vmem:[#allocation9 + $0x1c8] sm:$0xff]
          %v1905 = vld [vmem:[#allocation9 + $0x1d0] sm:$0xff]
          %v1906 = vld [vmem:[#allocation9 + $0x1d8] sm:$0xff]
          %v1907 = vld [vmem:[#allocation9 + $0x1e0] sm:$0xff]
          %v1908 = vld [vmem:[#allocation9 + $0x1e8] sm:$0xff]
          %v1909 = vld [vmem:[#allocation9 + $0x1f0] sm:$0xff]
          %v1910 = vld [vmem:[#allocation9 + $0x1f8] sm:$0xff]
          %v1911 = vld [vmem:[%s4] sm:$0x1]
          %v1913 = vlaneseq
          %v1914 = vshrl.u32 %v1913, 7
          %v1915 = vsub.s32 0, %v1914
          %v1916 = vrot.slane %v1911, %v1915
          %1918 = vmatprep.subr.mxu0 0.0
          %1919 = vmatpush1.msra.mxu0 %v1862
          %1920 = vmatprep.subr.mxu0 0.0
          %1921 = vmatpush1.msra.mxu0 %v1861
          %1922 = vmatprep.subr.mxu0 0.0
          %1923 = vmatpush1.msra.mxu0 %v1860
          %1924 = vmatprep.subr.mxu0 0.0
          %1925 = vmatpush1.msra.mxu0 %v1859
          %1926 = vmatprep.subr.mxu0 0.0
          %1927 = vmatpush1.msra.mxu0 %v1858
          %1928 = vmatprep.subr.mxu0 0.0
          %1929 = vmatpush1.msra.mxu0 %v1857
          %1930 = vmatprep.subr.mxu0 0.0
          %1931 = vmatpush1.msra.mxu0 %v1856
          %1932 = vmatprep.subr.mxu0 0.0
          %1933 = vmatpush1.msra.mxu0 %v1855
          %1934 = vmatprep.subr.mxu0 0.0
          %1935 = vmatpush1.msra.mxu0 %v1854
          %1936 = vmatprep.subr.mxu0 0.0
          %1937 = vmatpush1.msra.mxu0 %v1853
          %1938 = vmatprep.subr.mxu0 0.0
          %1939 = vmatpush1.msra.mxu0 %v1852
          %1940 = vmatprep.subr.mxu0 0.0
          %1941 = vmatpush1.msra.mxu0 %v1851
          %1942 = vmatprep.subr.mxu0 0.0
          %1943 = vmatpush1.msra.mxu0 %v1850
          %1944 = vmatprep.subr.mxu0 0.0
          %1945 = vmatpush1.msra.mxu0 %v1849
          %1946 = vmatprep.subr.mxu0 0.0
          %1947 = vmatpush1.msra.mxu0 %v1848
          %1948 = vmatprep.subr.mxu0 0.0
          %1949 = vmatpush1.msra.mxu0 %v1847
          %1950 = vmatprep.subr.mxu0 0.0
          %1951 = vmatpush2.msra.mxu0 %v1878
          %1952 = vmatprep.subr.mxu0 0.0
          %1953 = vmatpush2.msra.mxu0 %v1877
          %1954 = vmatprep.subr.mxu0 0.0
          %1955 = vmatpush2.msra.mxu0 %v1876
          %1956 = vmatprep.subr.mxu0 0.0
          %1957 = vmatpush2.msra.mxu0 %v1875
          %1958 = vmatprep.subr.mxu0 0.0
          %1959 = vmatpush2.msra.mxu0 %v1874
          %1960 = vmatprep.subr.mxu0 0.0
          %1961 = vmatpush2.msra.mxu0 %v1873
          %1962 = vmatprep.subr.mxu0 0.0
          %1963 = vmatpush2.msra.mxu0 %v1872
          %1964 = vmatprep.subr.mxu0 0.0
          %1965 = vmatpush2.msra.mxu0 %v1871
          %1966 = vmatprep.subr.mxu0 0.0
          %1967 = vmatpush2.msra.mxu0 %v1870
          %1968 = vmatprep.subr.mxu0 0.0
          %1969 = vmatpush2.msra.mxu0 %v1869
          %1970 = vmatprep.subr.mxu0 0.0
          %1971 = vmatpush2.msra.mxu0 %v1868
          %1972 = vmatprep.subr.mxu0 0.0
          %1973 = vmatpush2.msra.mxu0 %v1867
          %1974 = vmatprep.subr.mxu0 0.0
          %1975 = vmatpush2.msra.mxu0 %v1866
          %1976 = vmatprep.subr.mxu0 0.0
          %1977 = vmatpush2.msra.mxu0 %v1865
          %1978 = vmatprep.subr.mxu0 0.0
          %1979 = vmatpush2.msra.mxu0 %v1864
          %1980 = vmatprep.subr.mxu0 0.0
          %1981 = vmatpush2.msra.mxu0 %v1863
          %1982 = vmatprep.mubr.f32.mxu0 %v1720
          %1983 = vmatmul.mubr.f32.gmra.mxu0 %v1719
          %v1984 = vpop.f32.mrf.mxu0
          %v1985 = vadd.f32 %v1916, %v1984
          %v1986 = vpop.f32.mrf.mxu0
          %1987 = vmatprep.mubr.f32.mxu0 %v1724
          %1988 = vmatmul.mubr.f32.gmra.mxu0 %v1723
          %v1989 = vpop.f32.mrf.mxu0
          %v1990 = vadd.f32 %v1916, %v1989
          %v1991 = vpop.f32.mrf.mxu0
          %1992 = vmatprep.mubr.f32.mxu0 %v1728
          %1993 = vmatmul.mubr.f32.gmra.mxu0 %v1727
          %v1994 = vpop.f32.mrf.mxu0
          %v1995 = vadd.f32 %v1916, %v1994
          %v1996 = vpop.f32.mrf.mxu0
          %1997 = vmatprep.mubr.f32.mxu0 %v1732
          %1998 = vmatmul.mubr.f32.gmra.mxu0 %v1731
          %v1999 = vpop.f32.mrf.mxu0
          %v2000 = vadd.f32 %v1916, %v1999
          %v2001 = vpop.f32.mrf.mxu0
          %2002 = vmatprep.mubr.f32.mxu0 %v1736
          %2003 = vmatmul.mubr.f32.gmra.mxu0 %v1735
          %v2004 = vpop.f32.mrf.mxu0
          %v2005 = vadd.f32 %v1916, %v2004
          %v2006 = vpop.f32.mrf.mxu0
          %2007 = vmatprep.mubr.f32.mxu0 %v1740
          %2008 = vmatmul.mubr.f32.gmra.mxu0 %v1739
          %v2009 = vpop.f32.mrf.mxu0
          %v2010 = vadd.f32 %v1916, %v2009
          %v2011 = vpop.f32.mrf.mxu0
          %2012 = vmatprep.mubr.f32.mxu0 %v1744
          %2013 = vmatmul.mubr.f32.gmra.mxu0 %v1743
          %v2014 = vpop.f32.mrf.mxu0
          %v2015 = vadd.f32 %v1916, %v2014
          %v2016 = vpop.f32.mrf.mxu0
          %2017 = vmatprep.mubr.f32.mxu0 %v1748
          %2018 = vmatmul.mubr.f32.gmra.mxu0 %v1747
          %v2019 = vpop.f32.mrf.mxu0
          %v2020 = vadd.f32 %v1916, %v2019
          %v2021 = vpop.f32.mrf.mxu0
          %2022 = vmatprep.mubr.f32.mxu0 %v1752
          %2023 = vmatmul.mubr.f32.gmra.mxu0 %v1751
          %v2024 = vpop.f32.mrf.mxu0
          %v2025 = vadd.f32 %v1916, %v2024
          %v2026 = vpop.f32.mrf.mxu0
          %2027 = vmatprep.mubr.f32.mxu0 %v1756
          %2028 = vmatmul.mubr.f32.gmra.mxu0 %v1755
          %v2029 = vpop.f32.mrf.mxu0
          %v2030 = vadd.f32 %v1916, %v2029
          %v2031 = vpop.f32.mrf.mxu0
          %2032 = vmatprep.mubr.f32.mxu0 %v1760
          %2033 = vmatmul.mubr.f32.gmra.mxu0 %v1759
          %v2034 = vpop.f32.mrf.mxu0
          %v2035 = vadd.f32 %v1916, %v2034
          %v2036 = vpop.f32.mrf.mxu0
          %2037 = vmatprep.mubr.f32.mxu0 %v1764
          %2038 = vmatmul.mubr.f32.gmra.mxu0 %v1763
          %v2039 = vpop.f32.mrf.mxu0
          %v2040 = vadd.f32 %v1916, %v2039
          %v2041 = vpop.f32.mrf.mxu0
          %2042 = vmatprep.mubr.f32.mxu0 %v1768
          %2043 = vmatmul.mubr.f32.gmra.mxu0 %v1767
          %v2044 = vpop.f32.mrf.mxu0
          %v2045 = vadd.f32 %v1916, %v2044
          %v2046 = vpop.f32.mrf.mxu0
          %2047 = vmatprep.mubr.f32.mxu0 %v1772
          %2048 = vmatmul.mubr.f32.gmra.mxu0 %v1771
          %v2049 = vpop.f32.mrf.mxu0
          %v2050 = vadd.f32 %v1916, %v2049
          %v2051 = vpop.f32.mrf.mxu0
          %2052 = vmatprep.mubr.f32.mxu0 %v1776
          %2053 = vmatmul.mubr.f32.gmra.mxu0 %v1775
          %v2054 = vpop.f32.mrf.mxu0
          %v2055 = vadd.f32 %v1916, %v2054
          %v2056 = vpop.f32.mrf.mxu0
          %2057 = vmatprep.mubr.f32.mxu0 %v1780
          %2058 = vmatmul.mubr.f32.gmra.mxu0 %v1779
          %v2059 = vpop.f32.mrf.mxu0
          %v2060 = vadd.f32 %v1916, %v2059
          %v2061 = vpop.f32.mrf.mxu0
          %2062 = vmatprep.mubr.f32.mxu0 %v1784
          %2063 = vmatmul.mubr.f32.gmra.mxu0 %v1783
          %v2064 = vpop.f32.mrf.mxu0
          %v2065 = vadd.f32 %v1916, %v2064
          %v2066 = vpop.f32.mrf.mxu0
          %2067 = vmatprep.mubr.f32.mxu0 %v1788
          %2068 = vmatmul.mubr.f32.gmra.mxu0 %v1787
          %v2069 = vpop.f32.mrf.mxu0
          %v2070 = vadd.f32 %v1916, %v2069
          %v2071 = vpop.f32.mrf.mxu0
          %2072 = vmatprep.mubr.f32.mxu0 %v1792
          %2073 = vmatmul.mubr.f32.gmra.mxu0 %v1791
          %v2074 = vpop.f32.mrf.mxu0
          %v2075 = vadd.f32 %v1916, %v2074
          %v2076 = vpop.f32.mrf.mxu0
          %2077 = vmatprep.mubr.f32.mxu0 %v1796
          %2078 = vmatmul.mubr.f32.gmra.mxu0 %v1795
          %v2079 = vpop.f32.mrf.mxu0
          %v2080 = vadd.f32 %v1916, %v2079
          %v2081 = vpop.f32.mrf.mxu0
          %2082 = vmatprep.mubr.f32.mxu0 %v1800
          %2083 = vmatmul.mubr.f32.gmra.mxu0 %v1799
          %v2084 = vpop.f32.mrf.mxu0
          %v2085 = vadd.f32 %v1916, %v2084
          %v2086 = vpop.f32.mrf.mxu0
          %2087 = vmatprep.mubr.f32.mxu0 %v1804
          %2088 = vmatmul.mubr.f32.gmra.mxu0 %v1803
          %v2089 = vpop.f32.mrf.mxu0
          %v2090 = vadd.f32 %v1916, %v2089
          %v2091 = vpop.f32.mrf.mxu0
          %2092 = vmatprep.mubr.f32.mxu0 %v1808
          %2093 = vmatmul.mubr.f32.gmra.mxu0 %v1807
          %v2094 = vpop.f32.mrf.mxu0
          %v2095 = vadd.f32 %v1916, %v2094
          %v2096 = vpop.f32.mrf.mxu0
          %2097 = vmatprep.mubr.f32.mxu0 %v1812
          %2098 = vmatmul.mubr.f32.gmra.mxu0 %v1811
          %v2099 = vpop.f32.mrf.mxu0
          %v2100 = vadd.f32 %v1916, %v2099
          %v2101 = vpop.f32.mrf.mxu0
          %2102 = vmatprep.mubr.f32.mxu0 %v1816
          %2103 = vmatmul.mubr.f32.gmra.mxu0 %v1815
          %v2104 = vpop.f32.mrf.mxu0
          %v2105 = vadd.f32 %v1916, %v2104
          %v2106 = vpop.f32.mrf.mxu0
          %2107 = vmatprep.mubr.f32.mxu0 %v1820
          %2108 = vmatmul.mubr.f32.gmra.mxu0 %v1819
          %v2109 = vpop.f32.mrf.mxu0
          %v2110 = vadd.f32 %v1916, %v2109
          %v2111 = vpop.f32.mrf.mxu0
          %2112 = vmatprep.mubr.f32.mxu0 %v1824
          %2113 = vmatmul.mubr.f32.gmra.mxu0 %v1823
          %v2114 = vpop.f32.mrf.mxu0
          %v2115 = vadd.f32 %v1916, %v2114
          %v2116 = vpop.f32.mrf.mxu0
          %2117 = vmatprep.mubr.f32.mxu0 %v1828
          %2118 = vmatmul.mubr.f32.gmra.mxu0 %v1827
          %v2119 = vpop.f32.mrf.mxu0
          %v2120 = vadd.f32 %v1916, %v2119
          %v2121 = vpop.f32.mrf.mxu0
          %2122 = vmatprep.mubr.f32.mxu0 %v1832
          %2123 = vmatmul.mubr.f32.gmra.mxu0 %v1831
          %v2124 = vpop.f32.mrf.mxu0
          %v2125 = vadd.f32 %v1916, %v2124
          %v2126 = vpop.f32.mrf.mxu0
          %2127 = vmatprep.mubr.f32.mxu0 %v1836
          %2128 = vmatmul.mubr.f32.gmra.mxu0 %v1835
          %v2129 = vpop.f32.mrf.mxu0
          %v2130 = vadd.f32 %v1916, %v2129
          %v2131 = vpop.f32.mrf.mxu0
          %2132 = vmatprep.mubr.f32.mxu0 %v1840
          %2133 = vmatmul.mubr.f32.gmra.mxu0 %v1839
          %v2134 = vpop.f32.mrf.mxu0
          %v2135 = vadd.f32 %v1916, %v2134
          %v2136 = vpop.f32.mrf.mxu0
          %2137 = vmatprep.mubr.f32.mxu0 %v1844
          %2138 = vmatmul.mubr.f32.gmra.mxu0 %v1843
          %v2139 = vpop.f32.mrf.mxu0
          %v2140 = vadd.f32 %v1916, %v2139
          %v2141 = vpop.f32.mrf.mxu0
          %2142 = vdwg.mxu0
          %2143 = vmatprep.subr.mxu0 0.0
          %2144 = vmatpush1.msra.mxu0 %v1894
          %2145 = vmatprep.subr.mxu0 0.0
          %2146 = vmatpush1.msra.mxu0 %v1893
          %2147 = vmatprep.subr.mxu0 0.0
          %2148 = vmatpush1.msra.mxu0 %v1892
          %2149 = vmatprep.subr.mxu0 0.0
          %2150 = vmatpush1.msra.mxu0 %v1891
          %2151 = vmatprep.subr.mxu0 0.0
          %2152 = vmatpush1.msra.mxu0 %v1890
          %2153 = vmatprep.subr.mxu0 0.0
          %2154 = vmatpush1.msra.mxu0 %v1889
          %2155 = vmatprep.subr.mxu0 0.0
          %2156 = vmatpush1.msra.mxu0 %v1888
          %2157 = vmatprep.subr.mxu0 0.0
          %2158 = vmatpush1.msra.mxu0 %v1887
          %2159 = vmatprep.subr.mxu0 0.0
          %2160 = vmatpush1.msra.mxu0 %v1886
          %2161 = vmatprep.subr.mxu0 0.0
          %2162 = vmatpush1.msra.mxu0 %v1885
          %2163 = vmatprep.subr.mxu0 0.0
          %2164 = vmatpush1.msra.mxu0 %v1884
          %2165 = vmatprep.subr.mxu0 0.0
          %2166 = vmatpush1.msra.mxu0 %v1883
          %2167 = vmatprep.subr.mxu0 0.0
          %2168 = vmatpush1.msra.mxu0 %v1882
          %2169 = vmatprep.subr.mxu0 0.0
          %2170 = vmatpush1.msra.mxu0 %v1881
          %2171 = vmatprep.subr.mxu0 0.0
          %2172 = vmatpush1.msra.mxu0 %v1880
          %2173 = vmatprep.subr.mxu0 0.0
          %2174 = vmatpush1.msra.mxu0 %v1879
          %2175 = vmatprep.subr.mxu0 0.0
          %2176 = vmatpush2.msra.mxu0 %v1910
          %2177 = vmatprep.subr.mxu0 0.0
          %2178 = vmatpush2.msra.mxu0 %v1909
          %2179 = vmatprep.subr.mxu0 0.0
          %2180 = vmatpush2.msra.mxu0 %v1908
          %2181 = vmatprep.subr.mxu0 0.0
          %2182 = vmatpush2.msra.mxu0 %v1907
          %2183 = vmatprep.subr.mxu0 0.0
          %2184 = vmatpush2.msra.mxu0 %v1906
          %2185 = vmatprep.subr.mxu0 0.0
          %2186 = vmatpush2.msra.mxu0 %v1905
          %2187 = vmatprep.subr.mxu0 0.0
          %2188 = vmatpush2.msra.mxu0 %v1904
          %2189 = vmatprep.subr.mxu0 0.0
          %2190 = vmatpush2.msra.mxu0 %v1903
          %2191 = vmatprep.subr.mxu0 0.0
          %2192 = vmatpush2.msra.mxu0 %v1902
          %2193 = vmatprep.subr.mxu0 0.0
          %2194 = vmatpush2.msra.mxu0 %v1901
          %2195 = vmatprep.subr.mxu0 0.0
          %2196 = vmatpush2.msra.mxu0 %v1900
          %2197 = vmatprep.subr.mxu0 0.0
          %2198 = vmatpush2.msra.mxu0 %v1899
          %2199 = vmatprep.subr.mxu0 0.0
          %2200 = vmatpush2.msra.mxu0 %v1898
          %2201 = vmatprep.subr.mxu0 0.0
          %2202 = vmatpush2.msra.mxu0 %v1897
          %2203 = vmatprep.subr.mxu0 0.0
          %2204 = vmatpush2.msra.mxu0 %v1896
          %2205 = vmatprep.subr.mxu0 0.0
          %2206 = vmatpush2.msra.mxu0 %v1895
          %2207 = vmatprep.mubr.f32.mxu0 %v1722
          %2208 = vmatmul.mubr.f32.gmra.mxu0 %v1721
          %v2209 = vpop.f32.mrf.mxu0
          %v2210 = vadd.f32 %v1985, %v2209
          %v2211 = vpop.f32.mrf.mxu0
          %2212 = vmatprep.mubr.f32.mxu0 %v1726
          %2213 = vmatmul.mubr.f32.gmra.mxu0 %v1725
          %v2214 = vpop.f32.mrf.mxu0
          %v2215 = vadd.f32 %v1990, %v2214
          %v2216 = vpop.f32.mrf.mxu0
          %2217 = vmatprep.mubr.f32.mxu0 %v1730
          %2218 = vmatmul.mubr.f32.gmra.mxu0 %v1729
          %v2219 = vpop.f32.mrf.mxu0
          %v2220 = vadd.f32 %v1995, %v2219
          %v2221 = vpop.f32.mrf.mxu0
          %2222 = vmatprep.mubr.f32.mxu0 %v1734
          %2223 = vmatmul.mubr.f32.gmra.mxu0 %v1733
          %v2224 = vpop.f32.mrf.mxu0
          %v2225 = vadd.f32 %v2000, %v2224
          %v2226 = vpop.f32.mrf.mxu0
          %2227 = vmatprep.mubr.f32.mxu0 %v1738
          %2228 = vmatmul.mubr.f32.gmra.mxu0 %v1737
          %v2229 = vpop.f32.mrf.mxu0
          %v2230 = vadd.f32 %v2005, %v2229
          %v2231 = vpop.f32.mrf.mxu0
          %2232 = vmatprep.mubr.f32.mxu0 %v1742
          %2233 = vmatmul.mubr.f32.gmra.mxu0 %v1741
          %v2234 = vpop.f32.mrf.mxu0
          %v2235 = vadd.f32 %v2010, %v2234
          %v2236 = vpop.f32.mrf.mxu0
          %2237 = vmatprep.mubr.f32.mxu0 %v1746
          %2238 = vmatmul.mubr.f32.gmra.mxu0 %v1745
          %v2239 = vpop.f32.mrf.mxu0
          %v2240 = vadd.f32 %v2015, %v2239
          %v2241 = vpop.f32.mrf.mxu0
          %2242 = vmatprep.mubr.f32.mxu0 %v1750
          %2243 = vmatmul.mubr.f32.gmra.mxu0 %v1749
          %v2244 = vpop.f32.mrf.mxu0
          %v2245 = vadd.f32 %v2020, %v2244
          %v2246 = vpop.f32.mrf.mxu0
          %2247 = vmatprep.mubr.f32.mxu0 %v1754
          %2248 = vmatmul.mubr.f32.gmra.mxu0 %v1753
          %v2249 = vpop.f32.mrf.mxu0
          %v2250 = vadd.f32 %v2025, %v2249
          %v2251 = vpop.f32.mrf.mxu0
          %2252 = vmatprep.mubr.f32.mxu0 %v1758
          %2253 = vmatmul.mubr.f32.gmra.mxu0 %v1757
          %v2254 = vpop.f32.mrf.mxu0
          %v2255 = vadd.f32 %v2030, %v2254
          %v2256 = vpop.f32.mrf.mxu0
          %2257 = vmatprep.mubr.f32.mxu0 %v1762
          %2258 = vmatmul.mubr.f32.gmra.mxu0 %v1761
          %v2259 = vpop.f32.mrf.mxu0
          %v2260 = vadd.f32 %v2035, %v2259
          %v2261 = vpop.f32.mrf.mxu0
          %2262 = vmatprep.mubr.f32.mxu0 %v1766
          %2263 = vmatmul.mubr.f32.gmra.mxu0 %v1765
          %v2264 = vpop.f32.mrf.mxu0
          %v2265 = vadd.f32 %v2040, %v2264
          %v2266 = vpop.f32.mrf.mxu0
          %2267 = vmatprep.mubr.f32.mxu0 %v1770
          %2268 = vmatmul.mubr.f32.gmra.mxu0 %v1769
          %v2269 = vpop.f32.mrf.mxu0
          %v2270 = vadd.f32 %v2045, %v2269
          %v2271 = vpop.f32.mrf.mxu0
          %2272 = vmatprep.mubr.f32.mxu0 %v1774
          %2273 = vmatmul.mubr.f32.gmra.mxu0 %v1773
          %v2274 = vpop.f32.mrf.mxu0
          %v2275 = vadd.f32 %v2050, %v2274
          %v2276 = vpop.f32.mrf.mxu0
          %2277 = vmatprep.mubr.f32.mxu0 %v1778
          %2278 = vmatmul.mubr.f32.gmra.mxu0 %v1777
          %v2279 = vpop.f32.mrf.mxu0
          %v2280 = vadd.f32 %v2055, %v2279
          %v2281 = vpop.f32.mrf.mxu0
          %2282 = vmatprep.mubr.f32.mxu0 %v1782
          %2283 = vmatmul.mubr.f32.gmra.mxu0 %v1781
          %v2284 = vpop.f32.mrf.mxu0
          %v2285 = vadd.f32 %v2060, %v2284
          %v2286 = vpop.f32.mrf.mxu0
          %2287 = vmatprep.mubr.f32.mxu0 %v1786
          %2288 = vmatmul.mubr.f32.gmra.mxu0 %v1785
          %v2289 = vpop.f32.mrf.mxu0
          %v2290 = vadd.f32 %v2065, %v2289
          %v2291 = vpop.f32.mrf.mxu0
          %2292 = vmatprep.mubr.f32.mxu0 %v1790
          %2293 = vmatmul.mubr.f32.gmra.mxu0 %v1789
          %v2294 = vpop.f32.mrf.mxu0
          %v2295 = vadd.f32 %v2070, %v2294
          %v2296 = vpop.f32.mrf.mxu0
          %2297 = vmatprep.mubr.f32.mxu0 %v1794
          %2298 = vmatmul.mubr.f32.gmra.mxu0 %v1793
          %v2299 = vpop.f32.mrf.mxu0
          %v2300 = vadd.f32 %v2075, %v2299
          %v2301 = vpop.f32.mrf.mxu0
          %2302 = vmatprep.mubr.f32.mxu0 %v1798
          %2303 = vmatmul.mubr.f32.gmra.mxu0 %v1797
          %v2304 = vpop.f32.mrf.mxu0
          %v2305 = vadd.f32 %v2080, %v2304
          %v2306 = vpop.f32.mrf.mxu0
          %2307 = vmatprep.mubr.f32.mxu0 %v1802
          %2308 = vmatmul.mubr.f32.gmra.mxu0 %v1801
          %v2309 = vpop.f32.mrf.mxu0
          %v2310 = vadd.f32 %v2085, %v2309
          %v2311 = vpop.f32.mrf.mxu0
          %2312 = vmatprep.mubr.f32.mxu0 %v1806
          %2313 = vmatmul.mubr.f32.gmra.mxu0 %v1805
          %v2314 = vpop.f32.mrf.mxu0
          %v2315 = vadd.f32 %v2090, %v2314
          %v2316 = vpop.f32.mrf.mxu0
          %2317 = vmatprep.mubr.f32.mxu0 %v1810
          %2318 = vmatmul.mubr.f32.gmra.mxu0 %v1809
          %v2319 = vpop.f32.mrf.mxu0
          %v2320 = vadd.f32 %v2095, %v2319
          %v2321 = vpop.f32.mrf.mxu0
          %2322 = vmatprep.mubr.f32.mxu0 %v1814
          %2323 = vmatmul.mubr.f32.gmra.mxu0 %v1813
          %v2324 = vpop.f32.mrf.mxu0
          %v2325 = vadd.f32 %v2100, %v2324
          %v2326 = vpop.f32.mrf.mxu0
          %2327 = vmatprep.mubr.f32.mxu0 %v1818
          %2328 = vmatmul.mubr.f32.gmra.mxu0 %v1817
          %v2329 = vpop.f32.mrf.mxu0
          %v2330 = vadd.f32 %v2105, %v2329
          %v2331 = vpop.f32.mrf.mxu0
          %2332 = vmatprep.mubr.f32.mxu0 %v1822
          %2333 = vmatmul.mubr.f32.gmra.mxu0 %v1821
          %v2334 = vpop.f32.mrf.mxu0
          %v2335 = vadd.f32 %v2110, %v2334
          %v2336 = vpop.f32.mrf.mxu0
          %2337 = vmatprep.mubr.f32.mxu0 %v1826
          %2338 = vmatmul.mubr.f32.gmra.mxu0 %v1825
          %v2339 = vpop.f32.mrf.mxu0
          %v2340 = vadd.f32 %v2115, %v2339
          %v2341 = vpop.f32.mrf.mxu0
          %2342 = vmatprep.mubr.f32.mxu0 %v1830
          %2343 = vmatmul.mubr.f32.gmra.mxu0 %v1829
          %v2344 = vpop.f32.mrf.mxu0
          %v2345 = vadd.f32 %v2120, %v2344
          %v2346 = vpop.f32.mrf.mxu0
          %2347 = vmatprep.mubr.f32.mxu0 %v1834
          %2348 = vmatmul.mubr.f32.gmra.mxu0 %v1833
          %v2349 = vpop.f32.mrf.mxu0
          %v2350 = vadd.f32 %v2125, %v2349
          %v2351 = vpop.f32.mrf.mxu0
          %2352 = vmatprep.mubr.f32.mxu0 %v1838
          %2353 = vmatmul.mubr.f32.gmra.mxu0 %v1837
          %v2354 = vpop.f32.mrf.mxu0
          %v2355 = vadd.f32 %v2130, %v2354
          %v2356 = vpop.f32.mrf.mxu0
          %2357 = vmatprep.mubr.f32.mxu0 %v1842
          %2358 = vmatmul.mubr.f32.gmra.mxu0 %v1841
          %v2359 = vpop.f32.mrf.mxu0
          %v2360 = vadd.f32 %v2135, %v2359
          %v2361 = vpop.f32.mrf.mxu0
          %2362 = vmatprep.mubr.f32.mxu0 %v1846
          %2363 = vmatmul.mubr.f32.gmra.mxu0 %v1845
          %v2364 = vpop.f32.mrf.mxu0
          %v2365 = vadd.f32 %v2140, %v2364
          %v2366 = vpop.f32.mrf.mxu0
          %2367 = vdwg.mxu0
          %2368 = vst [vmem:[%s308] sm:$0xff] %v2210
          %2369 = vst [vmem:[%s308 + $0x8] sm:$0xff] %v2215
          %2370 = vst [vmem:[%s308 + $0x10] sm:$0xff] %v2220
          %2371 = vst [vmem:[%s308 + $0x18] sm:$0xff] %v2225
          %2372 = vst [vmem:[%s308 + $0x20] sm:$0xff] %v2230
          %2373 = vst [vmem:[%s308 + $0x28] sm:$0xff] %v2235
          %2374 = vst [vmem:[%s308 + $0x30] sm:$0xff] %v2240
          %2375 = vst [vmem:[%s308 + $0x38] sm:$0xff] %v2245
          %2376 = vst [vmem:[%s308 + $0x40] sm:$0xff] %v2250
          %2377 = vst [vmem:[%s308 + $0x48] sm:$0xff] %v2255
          %2378 = vst [vmem:[%s308 + $0x50] sm:$0xff] %v2260
          %2379 = vst [vmem:[%s308 + $0x58] sm:$0xff] %v2265
          %2380 = vst [vmem:[%s308 + $0x60] sm:$0xff] %v2270
          %2381 = vst [vmem:[%s308 + $0x68] sm:$0xff] %v2275
          %2382 = vst [vmem:[%s308 + $0x70] sm:$0xff] %v2280
          %2383 = vst [vmem:[%s308 + $0x78] sm:$0xff] %v2285
          %2384 = vst [vmem:[%s308 + $0x80] sm:$0xff] %v2290
          %2385 = vst [vmem:[%s308 + $0x88] sm:$0xff] %v2295
          %2386 = vst [vmem:[%s308 + $0x90] sm:$0xff] %v2300
          %2387 = vst [vmem:[%s308 + $0x98] sm:$0xff] %v2305
          %2388 = vst [vmem:[%s308 + $0xa0] sm:$0xff] %v2310
          %2389 = vst [vmem:[%s308 + $0xa8] sm:$0xff] %v2315
          %2390 = vst [vmem:[%s308 + $0xb0] sm:$0xff] %v2320
          %2391 = vst [vmem:[%s308 + $0xb8] sm:$0xff] %v2325
          %2392 = vst [vmem:[%s308 + $0xc0] sm:$0xff] %v2330
          %2393 = vst [vmem:[%s308 + $0xc8] sm:$0xff] %v2335
          %2394 = vst [vmem:[%s308 + $0xd0] sm:$0xff] %v2340
          %2395 = vst [vmem:[%s308 + $0xd8] sm:$0xff] %v2345
          %2396 = vst [vmem:[%s308 + $0xe0] sm:$0xff] %v2350
          %2397 = vst [vmem:[%s308 + $0xe8] sm:$0xff] %v2355
          %2398 = vst [vmem:[%s308 + $0xf0] sm:$0xff] %v2360
          %2399 = vst [vmem:[%s308 + $0xf8] sm:$0xff] %v2365
        $region64: #{tpu_custom_call.1} parent=39 // pred_fallthru
          _
        %s2400 = sand.u32 %s161, 1
        %s2401 = scalar_lea.sflag [#allocation5], %s2400
        %s2402 = sand.u32 %s161, 1
        %s2403 = smul.addr %s2402, 256
        %s2404 = scalar_lea.vmem [#allocation11], %s2403
        // Predicated region
        $region65: #{tpu_custom_call.1} parent=39 // pred_check
          %p2405 = pneg %p171
        $region66: #{tpu_custom_call.1} parent=39 // pred_check_branch
          %2407 = sbr.rel (%p2405) target = $region68
        $region67: #{tpu_custom_call.1} parent=39 // pred_region
          %s2408 = smul.u32 32, %s28
          %s2410 = ssub.s32 4096, 4096
          %2411 = vsyncadd %s2401, %s2410
          %s2412 = smul.addr %s2408, 128
          %s2413 = scalar_lea.hbm %s5, %s2412
          %s2414 = sshll.u32 %s2404, 4
          %s2415 = int_to_ptr.vmem [resolvable:$true] %s2414
          %2420 = dma.vmem_to_hbm [thread:$0]  %s2415, 4096, %s2413, %s2401, 128, 128, 8
        $region68: #{tpu_custom_call.1} parent=39 // pred_fallthru
          _
      $region40: #{tpu_custom_call.1} parent=5 // pred_fallthru
        _
      %p2421 = scmp.le.s32.totalorder 2, %s19
      // Predicated region
      $region69: #{tpu_custom_call.1} parent=5 // pred_check
        %p2422 = pneg %p2421
      $region70: #{tpu_custom_call.1} parent=5 // pred_check_branch
        %2424 = sbr.rel (%p2422) target = $region72
      $region71: #{tpu_custom_call.1} parent=5 // pred_region
        %s2425 = ssub.s32 %s19, 2
        // Predicated region
        $region73: #{tpu_custom_call.1} parent=71 // pred_check
          %p2426 = pneg %p177
        $region74: #{tpu_custom_call.1} parent=71 // pred_check_branch
          %2428 = sbr.rel (%p2426) target = $region76
        $region75: #{tpu_custom_call.1} parent=71 // pred_region
          %s2429 = sand.u32 %s162, 1
          %s2430 = scalar_lea.sflag [#allocation5], %s2429
          %s2431 = sand.u32 %s162, 1
          %s2432 = smul.addr %s2431, 256
          %s2433 = scalar_lea.vmem [#allocation11], %s2432
          %2434 = dma.done %s2430, 4096
        $region76: #{tpu_custom_call.1} parent=71 // pred_fallthru
          _
      $region72: #{tpu_custom_call.1} parent=5 // pred_fallthru
        _
    $region6: #{tpu_custom_call.1} parent=1 // loop_footer
      %s23 = sadd.s32 1, %s19
    $region7: #{tpu_custom_call.1} parent=1 // loop_footer_branch
      %18 = sbr.rel target = $region3
    $region8: #{tpu_custom_call.1} parent=1 // loop_exit
      _
    %2435 = vsyncpa [#allocation4], 1
    %s2436 = scalar_lea.sflag [#allocation4], 1
    %2437 = vsyncpa %s2436, 1
    %2438 = vsyncpa [#allocation7], 1
    %2439 = vsyncpa [#allocation10], 1
    %2440 = vsyncpa [#allocation5], 1
    %s2441 = scalar_lea.sflag [#allocation5], 1
    %2442 = vsyncpa %s2441, 1

</llo_original>
